<compile_context>
chip_gen: v5e
topology: v5e:2x2
jax: 0.10.0
libtpu: 0.0.40
codegen_flags: <defaults>
</compile_context>

<pallas_src>
import jax
import jax.numpy as jnp
from jax.experimental import pallas as pl
from jax.experimental.pallas import tpu as pltpu

BN_EPS = 1e-5
LANES = 128

_VMEM = pl.BlockSpec(memory_space=pltpu.MemorySpace.VMEM)


def _ceil8(n):
    return -(-n // 8) * 8


# ----------------------------------------------------------------------------- param prep
def prepare_params(p, channels, num_layers, frames, action_size):
    """Fold eval-mode BN + biases into the weights, lay every weight out in the [K, N]
    (or grouped [G, K, N]) form the fused kernel consumes, and pack EVERYTHING into a
    single [rows, 128] f32 slab (row offsets padded to multiples of 8).  Runs once,
    outside jit.  Returns (slab, meta) where meta holds static (offset, K, N, stride)."""
    C0, C1, C2 = channels
    L0, L1 = num_layers
    D = frames

    def bn_fold_conv(w, b, scale, shift):
        cout, cin = w.shape[0], w.shape[1]
        ws = w.reshape(cout, cin, 3, 3) * scale[:, None, None, None]   # fold BN scale
        wk = jnp.transpose(ws, (2, 3, 1, 0))                           # [kh, kw, cin, cout]
        bk = b * scale + shift
        return wk, bk

    w0k, b0 = bn_fold_conv(p["conv0_w"], p["conv0_b"], p["conv0_scale"], p["conv0_shift"])
    w0 = w0k.reshape(9 * 3, C0)                    # rows = (kh, kw, cin)
    w1k, b1 = bn_fold_conv(p["conv1_w"], p["conv1_b"], p["conv1_scale"], p["conv1_shift"])
    w1 = w1k.reshape(9, C0, C1)                    # group = (kh, kw)
    w2k, b2 = bn_fold_conv(p["conv2_w"], p["conv2_b"], p["conv2_scale"], p["conv2_shift"])
    w2 = w2k.reshape(9, C1, C2)

    # fc0 rows follow torch .view(N,-1) order (c2, d); regroup to [D, C2, L0].
    assert p["fc0_w"].shape[0] == C2 * D
    wf0 = (p["fc0_w"] * p["fc0_scale"][None, :]).reshape(C2, D, L0)
    wf0 = jnp.transpose(wf0, (1, 0, 2))
    bf0 = p["fc0_b"] * p["fc0_scale"] + p["fc0_shift"]

    wf1 = p["fc1_w"] * p["fc1_scale"][None, :]
    bf1 = p["fc1_b"] * p["fc1_scale"] + p["fc1_shift"]

    # Dueling head merged: advantages first (lane 0..A-1), V in the last column.
    wh = jnp.concatenate([p["a_w"], p["v_w"]], axis=1)     # [L1, A+1]
    bh = jnp.concatenate([p["a_b"], p["v_b"]])             # [A+1]

    blocks, meta, row = [], {}, 0

    def add(name, groups):
        nonlocal row
        K, N = groups[0].shape
        Kp = _ceil8(K)
        meta[name] = (row, K, N, Kp)
        for g in groups:
            blocks.append(jnp.pad(g.astype(jnp.float32), ((0, Kp - K), (0, LANES - N))))
            row += Kp

    add("w0", [w0])
    add("w1", [w1[g] for g in range(9)])
    add("w2", [w2[g] for g in range(9)])
    add("wf0", [wf0[d] for d in range(D)])
    add("wf1", [wf1])
    add("wh", [wh])

    # One aligned [8, 128] bias tile, one bias per row (loaded once in-kernel).
    biases = [b0, b1, b2, bf0, bf1, bh]
    assert len(biases) <= 8
    btile = jnp.zeros((8, LANES), jnp.float32)
    for i, b in enumerate(biases):
        btile = btile.at[i, : b.shape[0]].set(b.astype(jnp.float32))
    meta["bias"] = (row, 8, LANES, 8)
    blocks.append(btile)
    row += 8

    slab = jnp.concatenate(blocks, axis=0)
    return slab, meta


# ----------------------------------------------------------------------------- fused kernel builder
def build_forward(meta, channels, num_layers, frames, action_size):
    C0, C1, C2 = channels
    L0, L1 = num_layers
    D = frames
    A = action_size
    boff = meta["bias"][0]

    def forward(params_slab, obs):
        """obs: [B, 3, frames, 27, 27] float32 (PyTorch NCDHW).  H=W=27 so the three
        stride-3 convs nest exactly (27 -> 9 -> 3 -> 1)."""
        B, Cin, DD, H, W = obs.shape
        assert H == 27 and W == 27 and Cin == 3 and DD == D

        # One-time input permutation into the "digit-nested" patch layout:
        #   h = 9*a_h + 3*b_h + c_h (c consumed by conv0, b by conv1, a by conv2), same for w.
        #   rows = ((b_h,b_w), (a_h,a_w), (d,n)-padded-to-8)   cols = (c_h, c_w, cin)
        R = D * B
        Rp = _ceil8(R)                                   # sublane-align the (d, n) rows
        x = obs.reshape(B, Cin, D, 3, 3, 3, 3, 3, 3)     # n ci d  a_h b_h c_h  a_w b_w c_w
        x = jnp.transpose(x, (4, 7, 3, 6, 2, 0, 5, 8, 1))  # b_h b_w a_h a_w d n  c_h c_w ci
        x = x.reshape(9, 9, R, 9 * Cin)
        if Rp != R:
            x = jnp.pad(x, ((0, 0), (0, 0), (0, Rp - R), (0, 0)))
        x = x.reshape(81 * Rp, 9 * Cin)                  # every later group block is 8-aligned

        Rg1 = 9 * Rp
        inv_ba = 1.0 / float(B * A)

        def kernel(x_ref, p_ref, o_ref):
            btile = p_ref[boff:boff + 8, :]              # all biases, one aligned tile

            def wslc(name, g=0):
                off, k, n, stride = meta[name]
                r0 = off + g * stride                    # static, 8-aligned offsets
                return p_ref[r0:r0 + k, 0:n]

            def bias(i, n):
                return btile[i:i + 1, 0:n]

            def dot(a, w):
                return jnp.dot(a, w, preferred_element_type=jnp.float32)

            def tree_sum(parts):
                while len(parts) > 1:
                    nxt = [parts[i] + parts[i + 1] for i in range(0, len(parts) - 1, 2)]
                    if len(parts) % 2:
                        nxt.append(parts[-1])
                    parts = nxt
                return parts[0]

            def grouped(xv, rows, wname, groups, bias_i, bias_n):
                # relu(sum_g xv[g-th row block] @ w[g] + b): pairwise-accumulate adjacent
                # partial products (bounds live partials) then tree-sum -> add chain ~4
                # instead of 9, with 8-aligned row-block selects.
                parts = []
                for g in range(groups):
                    d = dot(xv[g * rows:(g + 1) * rows], wslc(wname, g))
                    if parts and g % 2 == 1:
                        parts[-1] = parts[-1] + d
                    else:
                        parts.append(d)
                return jnp.maximum(tree_sum(parts) + bias(bias_i, bias_n), 0.0)

            # conv0: one GEMM over all 81*Rp rows (single RHS load into the MXU).
            y0 = jnp.maximum(dot(x_ref[...], wslc("w0")) + bias(0, C0), 0.0)   # [81*Rp, C0]
            # conv1: group (b_h,b_w); 72-row aligned blocks.
            y1 = grouped(y0, Rg1, "w1", 9, 1, C1)                              # [9*Rp, C1]
            # conv2: group (a_h,a_w); 8-row aligned blocks.
            y2 = grouped(y1, Rp, "w2", 9, 2, C2)                               # [Rp,   C2]
            # flatten(frames) + fc0: group = frame d (tiny slices of one [Rp,C2] tile;
            # pad rows >= D*B are never read).
            y3 = grouped(y2, B, "wf0", D, 3, L0)                               # [B, L0]
            # fc1
            y4 = jnp.maximum(dot(y3, wslc("wf1")) + bias(4, L1), 0.0)          # [B, L1]
            # merged dueling head: columns [0..A-1] = advantages, column A = V.
            va = dot(y4, wslc("wh")) + bias(5, A + 1)                          # [B, A+1]
            adv = va[:, 0:A]
            v = va[:, A:A + 1]
            # torch: v + (a - a.mean()) with a GLOBAL mean over batch AND actions.
            o_ref[...] = v + (adv - jnp.sum(adv) * inv_ba)

        n_flops = 2 * (81 * Rp * (9 * Cin) * C0 + 9 * Rg1 * C0 * C1 + 9 * Rp * C1 * C2
                       + D * B * C2 * L0 + B * L0 * L1 + B * L1 * (A + 1))
        n_bytes = (x.size + params_slab.size + B * A) * 4
        cost = pl.CostEstimate(flops=n_flops, transcendentals=0, bytes_accessed=n_bytes)

        return pl.pallas_call(
            kernel,
            out_shape=jax.ShapeDtypeStruct((B, A), jnp.float32),
            in_specs=[_VMEM, _VMEM],          # exactly 2 input DMAs: activations + param slab
            out_specs=_VMEM,
            cost_estimate=cost,
        )(x, params_slab)

    return forward


# ----------------------------------------------------------------------------- init (mirrors torch reset_parameters)
def init_params(key, channels, num_layers, action_size, conv_flat):
    ks = jax.random.split(key, 16)
    p = {}
    # Eval-mode BN with running_mean=0, running_var=1, gamma=1, beta=0:
    #   scale = gamma/sqrt(var+eps), shift = beta - mean*scale.
    bn_scale = 1.0 / jnp.sqrt(1.0 + BN_EPS)
    cin = 3
    for i, cout in enumerate(channels):
        lim_w = 1.0 / jnp.sqrt(float(cout))          # hidden_init quirk: fan_in = weight.size()[0]
        lim_b = 1.0 / jnp.sqrt(float(cin * 9))       # PyTorch default bias init
        p[f"conv{i}_w"] = jax.random.uniform(ks[2 * i], (cout, cin, 1, 3, 3), jnp.float32, -lim_w, lim_w)
        p[f"conv{i}_b"] = jax.random.uniform(ks[2 * i + 1], (cout,), jnp.float32, -lim_b, lim_b)
        p[f"conv{i}_scale"] = jnp.full((cout,), bn_scale, jnp.float32)
        p[f"conv{i}_shift"] = jnp.zeros((cout,), jnp.float32)
        cin = cout
    dims = [conv_flat] + list(num_layers)
    for i in range(len(num_layers)):
        din, dout = dims[i], dims[i + 1]
        lim_w = 1.0 / jnp.sqrt(float(dout))          # hidden_init quirk: uses out_features
        lim_b = 1.0 / jnp.sqrt(float(din))
        p[f"fc{i}_w"] = jax.random.uniform(ks[6 + 2 * i], (din, dout), jnp.float32, -lim_w, lim_w)
        p[f"fc{i}_b"] = jax.random.uniform(ks[7 + 2 * i], (dout,), jnp.float32, -lim_b, lim_b)
        p[f"fc{i}_scale"] = jnp.full((dout,), bn_scale, jnp.float32)
        p[f"fc{i}_shift"] = jnp.zeros((dout,), jnp.float32)
    d = num_layers[-1]
    lim_h = 1.0 / jnp.sqrt(float(d))
    p["v_w"] = jax.random.uniform(ks[12], (d, 1), jnp.float32, -0.003, 0.003)
    p["v_b"] = jax.random.uniform(ks[13], (1,), jnp.float32, -lim_h, lim_h)
    p["a_w"] = jax.random.uniform(ks[14], (d, action_size), jnp.float32, -0.003, 0.003)
    p["a_b"] = jax.random.uniform(ks[15], (action_size,), jnp.float32, -lim_h, lim_h)
    return p


# ----------------------------------------------------------------------------- plain-JAX reference (for self-check)
def reference_forward(p, obs, channels, num_layers):
    hi = jax.lax.Precision.HIGHEST
    x = obs
    for i in range(len(channels)):
        x = jax.lax.conv_general_dilated(
            x, p[f"conv{i}_w"], window_strides=(1, 3, 3), padding="VALID",
            dimension_numbers=("NCDHW", "OIDHW", "NCDHW"), precision=hi)
        x = x + p[f"conv{i}_b"][None, :, None, None, None]
        x = x * p[f"conv{i}_scale"][None, :, None, None, None] \
              + p[f"conv{i}_shift"][None, :, None, None, None]
        x = jnp.maximum(x, 0.0)
    x = x.reshape(x.shape[0], -1)                      # torch .view(N, -1): (C, D, H, W) order
    for i in range(len(num_layers)):
        x = jnp.dot(x, p[f"fc{i}_w"], precision=hi) + p[f"fc{i}_b"]
        x = x * p[f"fc{i}_scale"] + p[f"fc{i}_shift"]
        x = jnp.maximum(x, 0.0)
    v = jnp.dot(x, p["v_w"], precision=hi) + p["v_b"]
    a = jnp.dot(x, p["a_w"], precision=hi) + p["a_b"]
    return v + (a - a.mean())


# ----------------------------------------------------------------------------- main
if __name__ == "__main__":
    # state_size = (batch, H, W, 3) = (2, 27, 27, 3), frames_num = 2
    # -> observation NCDHW = (2, 3, 2, 27, 27); spatial 27 -> 9 -> 3 -> 1 through the conv stack.
    batch, frames, H, W = 2, 2, 27, 27
    action_size = 4
    channels = [16, 32, 32]
    num_layers = [64, 32]

    h_out = H
    for _ in channels:
        h_out = (h_out - 3) // 3 + 1
    conv_flat = channels[-1] * frames * h_out * h_out      # matches VQNetwork.conv_size_out

    key = jax.random.PRNGKey(0)
    kp, kx = jax.random.split(key)
    params = init_params(kp, channels, num_layers, action_size, conv_flat)
    obs = jax.random.normal(kx, (batch, 3, frames, H, W), jnp.float32)

    slab, meta = prepare_params(params, channels, num_layers, frames, action_size)  # once, outside jit
    forward = build_forward(meta, channels, num_layers, frames, action_size)

    fwd = jax.jit(forward)
    out = jax.block_until_ready(fwd(slab, obs))

    assert out.shape == (batch, action_size), out.shape
    assert out.dtype == jnp.float32

    ref = reference_forward(params, obs, channels, num_layers)
    assert bool(jnp.allclose(out, ref, atol=1e-3, rtol=1e-3)), (out, ref)
    print("KERNEL_OK")
</pallas_src>

<mosaic_0001>
module attributes {stable_mosaic.version = 11 : i64} {
  func.func @kernel(%arg0: memref<648x27xf32, #tpu.memory_space<vmem>>, %arg1: memref<632x128xf32, #tpu.memory_space<vmem>>, %arg2: memref<2x4xf32, #tpu.memory_space<vmem>>) attributes {dimension_semantics = [], scalar_prefetch = 0 : i64, scratch_operands = 0 : i64, tpu.core_type = #tpu.core_type<tc>} {
    %c624 = arith.constant 624 : index
    %c0 = arith.constant 0 : index
    %0 = vector.load %arg1[%c624, %c0] : memref<632x128xf32, #tpu.memory_space<vmem>>, vector<8x128xf32>
    %c0_0 = arith.constant 0 : index
    %c0_1 = arith.constant 0 : index
    %1 = vector.load %arg0[%c0_0, %c0_1] : memref<648x27xf32, #tpu.memory_space<vmem>>, vector<648x27xf32>
    %c0_2 = arith.constant 0 : index
    %c0_3 = arith.constant 0 : index
    %2 = vector.load %arg1[%c0_2, %c0_3] : memref<632x128xf32, #tpu.memory_space<vmem>>, vector<27x16xf32>
    %cst = arith.constant dense<0.000000e+00> : vector<648x16xf32>
    %3 = tpu.matmul %1, %2, %cst {dimension_numbers = #tpu.dot_dimension_numbers<[1], [0], [0], [1], [0, 0, 1, 1], [], []>} : vector<648x27xf32>, vector<27x16xf32>, vector<648x16xf32> -> vector<648x16xf32>
    %4 = vector.extract_strided_slice %0 {offsets = [0, 0], sizes = [1, 16], strides = [1, 1]} : vector<8x128xf32> to vector<1x16xf32>
    %5 = vector.broadcast %4 : vector<1x16xf32> to vector<648x16xf32>
    %6 = arith.addf %3, %5 : vector<648x16xf32>
    %cst_4 = arith.constant 0.000000e+00 : f32
    %7 = vector.broadcast %cst_4 : f32 to vector<648x16xf32>
    %8 = arith.maximumf %6, %7 : vector<648x16xf32>
    %9 = vector.extract_strided_slice %8 {offsets = [0, 0], sizes = [72, 16], strides = [1, 1]} : vector<648x16xf32> to vector<72x16xf32>
    %c32 = arith.constant 32 : index
    %c0_5 = arith.constant 0 : index
    %10 = vector.load %arg1[%c32, %c0_5] : memref<632x128xf32, #tpu.memory_space<vmem>>, vector<16x32xf32>
    %cst_6 = arith.constant dense<0.000000e+00> : vector<72x32xf32>
    %11 = tpu.matmul %9, %10, %cst_6 {dimension_numbers = #tpu.dot_dimension_numbers<[1], [0], [0], [1], [0, 0, 1, 1], [], []>} : vector<72x16xf32>, vector<16x32xf32>, vector<72x32xf32> -> vector<72x32xf32>
    %12 = vector.extract_strided_slice %8 {offsets = [72, 0], sizes = [72, 16], strides = [1, 1]} : vector<648x16xf32> to vector<72x16xf32>
    %c48 = arith.constant 48 : index
    %c0_7 = arith.constant 0 : index
    %13 = vector.load %arg1[%c48, %c0_7] : memref<632x128xf32, #tpu.memory_space<vmem>>, vector<16x32xf32>
    %cst_8 = arith.constant dense<0.000000e+00> : vector<72x32xf32>
    %14 = tpu.matmul %12, %13, %cst_8 {dimension_numbers = #tpu.dot_dimension_numbers<[1], [0], [0], [1], [0, 0, 1, 1], [], []>} : vector<72x16xf32>, vector<16x32xf32>, vector<72x32xf32> -> vector<72x32xf32>
    %15 = arith.addf %11, %14 : vector<72x32xf32>
    %16 = vector.extract_strided_slice %8 {offsets = [144, 0], sizes = [72, 16], strides = [1, 1]} : vector<648x16xf32> to vector<72x16xf32>
    %c64 = arith.constant 64 : index
    %c0_9 = arith.constant 0 : index
    %17 = vector.load %arg1[%c64, %c0_9] : memref<632x128xf32, #tpu.memory_space<vmem>>, vector<16x32xf32>
    %cst_10 = arith.constant dense<0.000000e+00> : vector<72x32xf32>
    %18 = tpu.matmul %16, %17, %cst_10 {dimension_numbers = #tpu.dot_dimension_numbers<[1], [0], [0], [1], [0, 0, 1, 1], [], []>} : vector<72x16xf32>, vector<16x32xf32>, vector<72x32xf32> -> vector<72x32xf32>
    %19 = vector.extract_strided_slice %8 {offsets = [216, 0], sizes = [72, 16], strides = [1, 1]} : vector<648x16xf32> to vector<72x16xf32>
    %c80 = arith.constant 80 : index
    %c0_11 = arith.constant 0 : index
    %20 = vector.load %arg1[%c80, %c0_11] : memref<632x128xf32, #tpu.memory_space<vmem>>, vector<16x32xf32>
    %cst_12 = arith.constant dense<0.000000e+00> : vector<72x32xf32>
    %21 = tpu.matmul %19, %20, %cst_12 {dimension_numbers = #tpu.dot_dimension_numbers<[1], [0], [0], [1], [0, 0, 1, 1], [], []>} : vector<72x16xf32>, vector<16x32xf32>, vector<72x32xf32> -> vector<72x32xf32>
    %22 = arith.addf %18, %21 : vector<72x32xf32>
    %23 = vector.extract_strided_slice %8 {offsets = [288, 0], sizes = [72, 16], strides = [1, 1]} : vector<648x16xf32> to vector<72x16xf32>
    %c96 = arith.constant 96 : index
    %c0_13 = arith.constant 0 : index
    %24 = vector.load %arg1[%c96, %c0_13] : memref<632x128xf32, #tpu.memory_space<vmem>>, vector<16x32xf32>
    %cst_14 = arith.constant dense<0.000000e+00> : vector<72x32xf32>
    %25 = tpu.matmul %23, %24, %cst_14 {dimension_numbers = #tpu.dot_dimension_numbers<[1], [0], [0], [1], [0, 0, 1, 1], [], []>} : vector<72x16xf32>, vector<16x32xf32>, vector<72x32xf32> -> vector<72x32xf32>
    %26 = vector.extract_strided_slice %8 {offsets = [360, 0], sizes = [72, 16], strides = [1, 1]} : vector<648x16xf32> to vector<72x16xf32>
    %c112 = arith.constant 112 : index
    %c0_15 = arith.constant 0 : index
    %27 = vector.load %arg1[%c112, %c0_15] : memref<632x128xf32, #tpu.memory_space<vmem>>, vector<16x32xf32>
    %cst_16 = arith.constant dense<0.000000e+00> : vector<72x32xf32>
    %28 = tpu.matmul %26, %27, %cst_16 {dimension_numbers = #tpu.dot_dimension_numbers<[1], [0], [0], [1], [0, 0, 1, 1], [], []>} : vector<72x16xf32>, vector<16x32xf32>, vector<72x32xf32> -> vector<72x32xf32>
    %29 = arith.addf %25, %28 : vector<72x32xf32>
    %30 = vector.extract_strided_slice %8 {offsets = [432, 0], sizes = [72, 16], strides = [1, 1]} : vector<648x16xf32> to vector<72x16xf32>
    %c128 = arith.constant 128 : index
    %c0_17 = arith.constant 0 : index
    %31 = vector.load %arg1[%c128, %c0_17] : memref<632x128xf32, #tpu.memory_space<vmem>>, vector<16x32xf32>
    %cst_18 = arith.constant dense<0.000000e+00> : vector<72x32xf32>
    %32 = tpu.matmul %30, %31, %cst_18 {dimension_numbers = #tpu.dot_dimension_numbers<[1], [0], [0], [1], [0, 0, 1, 1], [], []>} : vector<72x16xf32>, vector<16x32xf32>, vector<72x32xf32> -> vector<72x32xf32>
    %33 = vector.extract_strided_slice %8 {offsets = [504, 0], sizes = [72, 16], strides = [1, 1]} : vector<648x16xf32> to vector<72x16xf32>
    %c144 = arith.constant 144 : index
    %c0_19 = arith.constant 0 : index
    %34 = vector.load %arg1[%c144, %c0_19] : memref<632x128xf32, #tpu.memory_space<vmem>>, vector<16x32xf32>
    %cst_20 = arith.constant dense<0.000000e+00> : vector<72x32xf32>
    %35 = tpu.matmul %33, %34, %cst_20 {dimension_numbers = #tpu.dot_dimension_numbers<[1], [0], [0], [1], [0, 0, 1, 1], [], []>} : vector<72x16xf32>, vector<16x32xf32>, vector<72x32xf32> -> vector<72x32xf32>
    %36 = arith.addf %32, %35 : vector<72x32xf32>
    %37 = vector.extract_strided_slice %8 {offsets = [576, 0], sizes = [72, 16], strides = [1, 1]} : vector<648x16xf32> to vector<72x16xf32>
    %c160 = arith.constant 160 : index
    %c0_21 = arith.constant 0 : index
    %38 = vector.load %arg1[%c160, %c0_21] : memref<632x128xf32, #tpu.memory_space<vmem>>, vector<16x32xf32>
    %cst_22 = arith.constant dense<0.000000e+00> : vector<72x32xf32>
    %39 = tpu.matmul %37, %38, %cst_22 {dimension_numbers = #tpu.dot_dimension_numbers<[1], [0], [0], [1], [0, 0, 1, 1], [], []>} : vector<72x16xf32>, vector<16x32xf32>, vector<72x32xf32> -> vector<72x32xf32>
    %40 = arith.addf %15, %22 : vector<72x32xf32>
    %41 = arith.addf %29, %36 : vector<72x32xf32>
    %42 = arith.addf %40, %41 : vector<72x32xf32>
    %43 = arith.addf %42, %39 : vector<72x32xf32>
    %44 = vector.extract_strided_slice %0 {offsets = [1, 0], sizes = [1, 32], strides = [1, 1]} : vector<8x128xf32> to vector<1x32xf32>
    %45 = vector.broadcast %44 : vector<1x32xf32> to vector<72x32xf32>
    %46 = arith.addf %43, %45 : vector<72x32xf32>
    %cst_23 = arith.constant 0.000000e+00 : f32
    %47 = vector.broadcast %cst_23 : f32 to vector<72x32xf32>
    %48 = arith.maximumf %46, %47 : vector<72x32xf32>
    %49 = vector.extract_strided_slice %48 {offsets = [0, 0], sizes = [8, 32], strides = [1, 1]} : vector<72x32xf32> to vector<8x32xf32>
    %c176 = arith.constant 176 : index
    %c0_24 = arith.constant 0 : index
    %50 = vector.load %arg1[%c176, %c0_24] : memref<632x128xf32, #tpu.memory_space<vmem>>, vector<32x32xf32>
    %cst_25 = arith.constant dense<0.000000e+00> : vector<8x32xf32>
    %51 = tpu.matmul %49, %50, %cst_25 {dimension_numbers = #tpu.dot_dimension_numbers<[1], [0], [0], [1], [0, 0, 1, 1], [], []>} : vector<8x32xf32>, vector<32x32xf32>, vector<8x32xf32> -> vector<8x32xf32>
    %52 = vector.extract_strided_slice %48 {offsets = [8, 0], sizes = [8, 32], strides = [1, 1]} : vector<72x32xf32> to vector<8x32xf32>
    %c208 = arith.constant 208 : index
    %c0_26 = arith.constant 0 : index
    %53 = vector.load %arg1[%c208, %c0_26] : memref<632x128xf32, #tpu.memory_space<vmem>>, vector<32x32xf32>
    %cst_27 = arith.constant dense<0.000000e+00> : vector<8x32xf32>
    %54 = tpu.matmul %52, %53, %cst_27 {dimension_numbers = #tpu.dot_dimension_numbers<[1], [0], [0], [1], [0, 0, 1, 1], [], []>} : vector<8x32xf32>, vector<32x32xf32>, vector<8x32xf32> -> vector<8x32xf32>
    %55 = arith.addf %51, %54 : vector<8x32xf32>
    %56 = vector.extract_strided_slice %48 {offsets = [16, 0], sizes = [8, 32], strides = [1, 1]} : vector<72x32xf32> to vector<8x32xf32>
    %c240 = arith.constant 240 : index
    %c0_28 = arith.constant 0 : index
    %57 = vector.load %arg1[%c240, %c0_28] : memref<632x128xf32, #tpu.memory_space<vmem>>, vector<32x32xf32>
    %cst_29 = arith.constant dense<0.000000e+00> : vector<8x32xf32>
    %58 = tpu.matmul %56, %57, %cst_29 {dimension_numbers = #tpu.dot_dimension_numbers<[1], [0], [0], [1], [0, 0, 1, 1], [], []>} : vector<8x32xf32>, vector<32x32xf32>, vector<8x32xf32> -> vector<8x32xf32>
    %59 = vector.extract_strided_slice %48 {offsets = [24, 0], sizes = [8, 32], strides = [1, 1]} : vector<72x32xf32> to vector<8x32xf32>
    %c272 = arith.constant 272 : index
    %c0_30 = arith.constant 0 : index
    %60 = vector.load %arg1[%c272, %c0_30] : memref<632x128xf32, #tpu.memory_space<vmem>>, vector<32x32xf32>
    %cst_31 = arith.constant dense<0.000000e+00> : vector<8x32xf32>
    %61 = tpu.matmul %59, %60, %cst_31 {dimension_numbers = #tpu.dot_dimension_numbers<[1], [0], [0], [1], [0, 0, 1, 1], [], []>} : vector<8x32xf32>, vector<32x32xf32>, vector<8x32xf32> -> vector<8x32xf32>
    %62 = arith.addf %58, %61 : vector<8x32xf32>
    %63 = vector.extract_strided_slice %48 {offsets = [32, 0], sizes = [8, 32], strides = [1, 1]} : vector<72x32xf32> to vector<8x32xf32>
    %c304 = arith.constant 304 : index
    %c0_32 = arith.constant 0 : index
    %64 = vector.load %arg1[%c304, %c0_32] : memref<632x128xf32, #tpu.memory_space<vmem>>, vector<32x32xf32>
    %cst_33 = arith.constant dense<0.000000e+00> : vector<8x32xf32>
    %65 = tpu.matmul %63, %64, %cst_33 {dimension_numbers = #tpu.dot_dimension_numbers<[1], [0], [0], [1], [0, 0, 1, 1], [], []>} : vector<8x32xf32>, vector<32x32xf32>, vector<8x32xf32> -> vector<8x32xf32>
    %66 = vector.extract_strided_slice %48 {offsets = [40, 0], sizes = [8, 32], strides = [1, 1]} : vector<72x32xf32> to vector<8x32xf32>
    %c336 = arith.constant 336 : index
    %c0_34 = arith.constant 0 : index
    %67 = vector.load %arg1[%c336, %c0_34] : memref<632x128xf32, #tpu.memory_space<vmem>>, vector<32x32xf32>
    %cst_35 = arith.constant dense<0.000000e+00> : vector<8x32xf32>
    %68 = tpu.matmul %66, %67, %cst_35 {dimension_numbers = #tpu.dot_dimension_numbers<[1], [0], [0], [1], [0, 0, 1, 1], [], []>} : vector<8x32xf32>, vector<32x32xf32>, vector<8x32xf32> -> vector<8x32xf32>
    %69 = arith.addf %65, %68 : vector<8x32xf32>
    %70 = vector.extract_strided_slice %48 {offsets = [48, 0], sizes = [8, 32], strides = [1, 1]} : vector<72x32xf32> to vector<8x32xf32>
    %c368 = arith.constant 368 : index
    %c0_36 = arith.constant 0 : index
    %71 = vector.load %arg1[%c368, %c0_36] : memref<632x128xf32, #tpu.memory_space<vmem>>, vector<32x32xf32>
    %cst_37 = arith.constant dense<0.000000e+00> : vector<8x32xf32>
    %72 = tpu.matmul %70, %71, %cst_37 {dimension_numbers = #tpu.dot_dimension_numbers<[1], [0], [0], [1], [0, 0, 1, 1], [], []>} : vector<8x32xf32>, vector<32x32xf32>, vector<8x32xf32> -> vector<8x32xf32>
    %73 = vector.extract_strided_slice %48 {offsets = [56, 0], sizes = [8, 32], strides = [1, 1]} : vector<72x32xf32> to vector<8x32xf32>
    %c400 = arith.constant 400 : index
    %c0_38 = arith.constant 0 : index
    %74 = vector.load %arg1[%c400, %c0_38] : memref<632x128xf32, #tpu.memory_space<vmem>>, vector<32x32xf32>
    %cst_39 = arith.constant dense<0.000000e+00> : vector<8x32xf32>
    %75 = tpu.matmul %73, %74, %cst_39 {dimension_numbers = #tpu.dot_dimension_numbers<[1], [0], [0], [1], [0, 0, 1, 1], [], []>} : vector<8x32xf32>, vector<32x32xf32>, vector<8x32xf32> -> vector<8x32xf32>
    %76 = arith.addf %72, %75 : vector<8x32xf32>
    %77 = vector.extract_strided_slice %48 {offsets = [64, 0], sizes = [8, 32], strides = [1, 1]} : vector<72x32xf32> to vector<8x32xf32>
    %c432 = arith.constant 432 : index
    %c0_40 = arith.constant 0 : index
    %78 = vector.load %arg1[%c432, %c0_40] : memref<632x128xf32, #tpu.memory_space<vmem>>, vector<32x32xf32>
    %cst_41 = arith.constant dense<0.000000e+00> : vector<8x32xf32>
    %79 = tpu.matmul %77, %78, %cst_41 {dimension_numbers = #tpu.dot_dimension_numbers<[1], [0], [0], [1], [0, 0, 1, 1], [], []>} : vector<8x32xf32>, vector<32x32xf32>, vector<8x32xf32> -> vector<8x32xf32>
    %80 = arith.addf %55, %62 : vector<8x32xf32>
    %81 = arith.addf %69, %76 : vector<8x32xf32>
    %82 = arith.addf %80, %81 : vector<8x32xf32>
    %83 = arith.addf %82, %79 : vector<8x32xf32>
    %84 = vector.extract_strided_slice %0 {offsets = [2, 0], sizes = [1, 32], strides = [1, 1]} : vector<8x128xf32> to vector<1x32xf32>
    %85 = vector.broadcast %84 : vector<1x32xf32> to vector<8x32xf32>
    %86 = arith.addf %83, %85 : vector<8x32xf32>
    %cst_42 = arith.constant 0.000000e+00 : f32
    %87 = vector.broadcast %cst_42 : f32 to vector<8x32xf32>
    %88 = arith.maximumf %86, %87 : vector<8x32xf32>
    %89 = vector.extract_strided_slice %88 {offsets = [0, 0], sizes = [2, 32], strides = [1, 1]} : vector<8x32xf32> to vector<2x32xf32>
    %c464 = arith.constant 464 : index
    %c0_43 = arith.constant 0 : index
    %90 = vector.load %arg1[%c464, %c0_43] : memref<632x128xf32, #tpu.memory_space<vmem>>, vector<32x64xf32>
    %cst_44 = arith.constant dense<0.000000e+00> : vector<2x64xf32>
    %91 = tpu.matmul %89, %90, %cst_44 {dimension_numbers = #tpu.dot_dimension_numbers<[1], [0], [0], [1], [0, 0, 1, 1], [], []>} : vector<2x32xf32>, vector<32x64xf32>, vector<2x64xf32> -> vector<2x64xf32>
    %92 = vector.extract_strided_slice %88 {offsets = [2, 0], sizes = [2, 32], strides = [1, 1]} : vector<8x32xf32> to vector<2x32xf32>
    %c496 = arith.constant 496 : index
    %c0_45 = arith.constant 0 : index
    %93 = vector.load %arg1[%c496, %c0_45] : memref<632x128xf32, #tpu.memory_space<vmem>>, vector<32x64xf32>
    %cst_46 = arith.constant dense<0.000000e+00> : vector<2x64xf32>
    %94 = tpu.matmul %92, %93, %cst_46 {dimension_numbers = #tpu.dot_dimension_numbers<[1], [0], [0], [1], [0, 0, 1, 1], [], []>} : vector<2x32xf32>, vector<32x64xf32>, vector<2x64xf32> -> vector<2x64xf32>
    %95 = arith.addf %91, %94 : vector<2x64xf32>
    %96 = vector.extract_strided_slice %0 {offsets = [3, 0], sizes = [1, 64], strides = [1, 1]} : vector<8x128xf32> to vector<1x64xf32>
    %97 = vector.broadcast %96 : vector<1x64xf32> to vector<2x64xf32>
    %98 = arith.addf %95, %97 : vector<2x64xf32>
    %cst_47 = arith.constant 0.000000e+00 : f32
    %99 = vector.broadcast %cst_47 : f32 to vector<2x64xf32>
    %100 = arith.maximumf %98, %99 : vector<2x64xf32>
    %c528 = arith.constant 528 : index
    %c0_48 = arith.constant 0 : index
    %101 = vector.load %arg1[%c528, %c0_48] : memref<632x128xf32, #tpu.memory_space<vmem>>, vector<64x32xf32>
    %cst_49 = arith.constant dense<0.000000e+00> : vector<2x32xf32>
    %102 = tpu.matmul %100, %101, %cst_49 {dimension_numbers = #tpu.dot_dimension_numbers<[1], [0], [0], [1], [0, 0, 1, 1], [], []>} : vector<2x64xf32>, vector<64x32xf32>, vector<2x32xf32> -> vector<2x32xf32>
    %103 = vector.extract_strided_slice %0 {offsets = [4, 0], sizes = [1, 32], strides = [1, 1]} : vector<8x128xf32> to vector<1x32xf32>
    %104 = vector.broadcast %103 : vector<1x32xf32> to vector<2x32xf32>
    %105 = arith.addf %102, %104 : vector<2x32xf32>
    %cst_50 = arith.constant 0.000000e+00 : f32
    %106 = vector.broadcast %cst_50 : f32 to vector<2x32xf32>
    %107 = arith.maximumf %105, %106 : vector<2x32xf32>
    %c592 = arith.constant 592 : index
    %c0_51 = arith.constant 0 : index
    %108 = vector.load %arg1[%c592, %c0_51] : memref<632x128xf32, #tpu.memory_space<vmem>>, vector<32x5xf32>
    %cst_52 = arith.constant dense<0.000000e+00> : vector<2x5xf32>
    %109 = tpu.matmul %107, %108, %cst_52 {dimension_numbers = #tpu.dot_dimension_numbers<[1], [0], [0], [1], [0, 0, 1, 1], [], []>} : vector<2x32xf32>, vector<32x5xf32>, vector<2x5xf32> -> vector<2x5xf32>
    %110 = vector.extract_strided_slice %0 {offsets = [5, 0], sizes = [1, 5], strides = [1, 1]} : vector<8x128xf32> to vector<1x5xf32>
    %111 = vector.broadcast %110 : vector<1x5xf32> to vector<2x5xf32>
    %112 = arith.addf %109, %111 : vector<2x5xf32>
    %113 = vector.extract_strided_slice %112 {offsets = [0, 0], sizes = [2, 4], strides = [1, 1]} : vector<2x5xf32> to vector<2x4xf32>
    %114 = vector.extract_strided_slice %112 {offsets = [0, 4], sizes = [2, 1], strides = [1, 1]} : vector<2x5xf32> to vector<2x1xf32>
    %115 = vector.shape_cast %113 : vector<2x4xf32> to vector<1x2x4xf32>
    %cst_53 = arith.constant dense<0.000000e+00> : vector<1xf32>
    %116 = vector.multi_reduction <add>, %115, %cst_53 [1, 2] : vector<1x2x4xf32> to vector<1xf32>
    %117 = vector.shape_cast %116 : vector<1xf32> to vector<1x1x1xf32>
    %118 = vector.extract %117[0, 0, 0] : f32 from vector<1x1x1xf32>
    %cst_54 = arith.constant 1.250000e-01 : f32
    %119 = arith.mulf %118, %cst_54 : f32
    %120 = vector.broadcast %119 : f32 to vector<2x4xf32>
    %121 = arith.subf %113, %120 : vector<2x4xf32>
    %122 = vector.broadcast %114 : vector<2x1xf32> to vector<2x4xf32>
    %123 = arith.addf %122, %121 : vector<2x4xf32>
    %c0_55 = arith.constant 0 : index
    %c0_56 = arith.constant 0 : index
    %124 = vector.load %arg2[%c0_55, %c0_56] : memref<2x4xf32, #tpu.memory_space<vmem>>, vector<2x4xf32>
    tpu.vector_store %arg2[%c0_55, %c0_56], %123 {strides = array<i32>} : memref<2x4xf32, #tpu.memory_space<vmem>>, vector<2x4xf32>,
    return
  }
}

</mosaic_0001>

<llo_original>
// kernel: forward.1
$region0: #{forward.1}
  #allocation0 [shape = 'u32[]', space=smem, size = 0x4, offset = 0x4, fixed_abs, tag = 'smem constant byte address 0x4 - core index']
  #allocation1 [shape = 'u32[72,128]{1,0:T(1,128)}', space=vmem, size = 0x9000, scoped, tag = 'internal scratch']
  %s0 = inlined_call_operand.vmem [shape: f32[648,27], index: 0, kind: input, shape index: {}]
  %s1 = inlined_call_operand.vmem [shape: f32[632,128], index: 1, kind: input, shape index: {}]
  %s2 = inlined_call_operand.hbm [shape: f32[2,4], index: 2, kind: output, shape index: {}]
  %s3 = sld [smem:[#allocation0]]
  $region18: #{forward.1} parent=0
    _
  %s5 = ssub.s32 1, %s3
  %s6 = scalar_select 0, %s5, %s3
  $region1: #{forward.1} parent=0
    #allocation2 [shape = 'u8[1024]{0}', space=vmem, size = 0x400, scoped, tag = 'output window, operand 0, single buffered']
    #allocation3 [shape = 's32[1]{0}', space=sflag, size = 0x4, scoped, tag = 'scoped memory for forward.1']
    %7 = vsyncpa [#allocation3], 0
    // Predicated region
    $region2: #{forward.1} parent=1 // pred_check
      _
    $region3: #{forward.1} parent=1 // pred_check_branch
      %9 = sbr.rel (0) target = $region5
    $region4: #{forward.1} parent=1 // pred_region
      _
    $region5: #{forward.1} parent=1 // pred_fallthru
      _
    // Predicated region
    $region6: #{forward.1} parent=1 // pred_check
      _
    $region7: #{forward.1} parent=1 // pred_check_branch
      %11 = sbr.rel (0) target = $region9
    $region8: #{forward.1} parent=1 // pred_region
      _
    $region9: #{forward.1} parent=1 // pred_fallthru
      _
    %v12 = vld [vmem:[%s1 + $0x270] sm:$0xff]
    %v13 = vld [vmem:[%s0] sm:$0xff]
    %v14 = vld [vmem:[%s0 + $0x8] sm:$0xff]
    %v15 = vld [vmem:[%s0 + $0x10] sm:$0xff]
    %v16 = vld [vmem:[%s0 + $0x18] sm:$0xff]
    %v17 = vld [vmem:[%s0 + $0x20] sm:$0xff]
    %v18 = vld [vmem:[%s0 + $0x28] sm:$0xff]
    %v19 = vld [vmem:[%s0 + $0x30] sm:$0xff]
    %v20 = vld [vmem:[%s0 + $0x38] sm:$0xff]
    %v21 = vld [vmem:[%s0 + $0x40] sm:$0xff]
    %v22 = vld [vmem:[%s0 + $0x48] sm:$0xff]
    %v23 = vld [vmem:[%s0 + $0x50] sm:$0xff]
    %v24 = vld [vmem:[%s0 + $0x58] sm:$0xff]
    %v25 = vld [vmem:[%s0 + $0x60] sm:$0xff]
    %v26 = vld [vmem:[%s0 + $0x68] sm:$0xff]
    %v27 = vld [vmem:[%s0 + $0x70] sm:$0xff]
    %v28 = vld [vmem:[%s0 + $0x78] sm:$0xff]
    %v29 = vld [vmem:[%s0 + $0x80] sm:$0xff]
    %v30 = vld [vmem:[%s0 + $0x88] sm:$0xff]
    %v31 = vld [vmem:[%s0 + $0x90] sm:$0xff]
    %v32 = vld [vmem:[%s0 + $0x98] sm:$0xff]
    %v33 = vld [vmem:[%s0 + $0xa0] sm:$0xff]
    %v34 = vld [vmem:[%s0 + $0xa8] sm:$0xff]
    %v35 = vld [vmem:[%s0 + $0xb0] sm:$0xff]
    %v36 = vld [vmem:[%s0 + $0xb8] sm:$0xff]
    %v37 = vld [vmem:[%s0 + $0xc0] sm:$0xff]
    %v38 = vld [vmem:[%s0 + $0xc8] sm:$0xff]
    %v39 = vld [vmem:[%s0 + $0xd0] sm:$0xff]
    %v40 = vld [vmem:[%s0 + $0xd8] sm:$0xff]
    %v41 = vld [vmem:[%s0 + $0xe0] sm:$0xff]
    %v42 = vld [vmem:[%s0 + $0xe8] sm:$0xff]
    %v43 = vld [vmem:[%s0 + $0xf0] sm:$0xff]
    %v44 = vld [vmem:[%s0 + $0xf8] sm:$0xff]
    %v45 = vld [vmem:[%s0 + $0x100] sm:$0xff]
    %v46 = vld [vmem:[%s0 + $0x108] sm:$0xff]
    %v47 = vld [vmem:[%s0 + $0x110] sm:$0xff]
    %v48 = vld [vmem:[%s0 + $0x118] sm:$0xff]
    %v49 = vld [vmem:[%s0 + $0x120] sm:$0xff]
    %v50 = vld [vmem:[%s0 + $0x128] sm:$0xff]
    %v51 = vld [vmem:[%s0 + $0x130] sm:$0xff]
    %v52 = vld [vmem:[%s0 + $0x138] sm:$0xff]
    %v53 = vld [vmem:[%s0 + $0x140] sm:$0xff]
    %v54 = vld [vmem:[%s0 + $0x148] sm:$0xff]
    %v55 = vld [vmem:[%s0 + $0x150] sm:$0xff]
    %v56 = vld [vmem:[%s0 + $0x158] sm:$0xff]
    %v57 = vld [vmem:[%s0 + $0x160] sm:$0xff]
    %v58 = vld [vmem:[%s0 + $0x168] sm:$0xff]
    %v59 = vld [vmem:[%s0 + $0x170] sm:$0xff]
    %v60 = vld [vmem:[%s0 + $0x178] sm:$0xff]
    %v61 = vld [vmem:[%s0 + $0x180] sm:$0xff]
    %v62 = vld [vmem:[%s0 + $0x188] sm:$0xff]
    %v63 = vld [vmem:[%s0 + $0x190] sm:$0xff]
    %v64 = vld [vmem:[%s0 + $0x198] sm:$0xff]
    %v65 = vld [vmem:[%s0 + $0x1a0] sm:$0xff]
    %v66 = vld [vmem:[%s0 + $0x1a8] sm:$0xff]
    %v67 = vld [vmem:[%s0 + $0x1b0] sm:$0xff]
    %v68 = vld [vmem:[%s0 + $0x1b8] sm:$0xff]
    %v69 = vld [vmem:[%s0 + $0x1c0] sm:$0xff]
    %v70 = vld [vmem:[%s0 + $0x1c8] sm:$0xff]
    %v71 = vld [vmem:[%s0 + $0x1d0] sm:$0xff]
    %v72 = vld [vmem:[%s0 + $0x1d8] sm:$0xff]
    %v73 = vld [vmem:[%s0 + $0x1e0] sm:$0xff]
    %v74 = vld [vmem:[%s0 + $0x1e8] sm:$0xff]
    %v75 = vld [vmem:[%s0 + $0x1f0] sm:$0xff]
    %v76 = vld [vmem:[%s0 + $0x1f8] sm:$0xff]
    %v77 = vld [vmem:[%s0 + $0x200] sm:$0xff]
    %v78 = vld [vmem:[%s0 + $0x208] sm:$0xff]
    %v79 = vld [vmem:[%s0 + $0x210] sm:$0xff]
    %v80 = vld [vmem:[%s0 + $0x218] sm:$0xff]
    %v81 = vld [vmem:[%s0 + $0x220] sm:$0xff]
    %v82 = vld [vmem:[%s0 + $0x228] sm:$0xff]
    %v83 = vld [vmem:[%s0 + $0x230] sm:$0xff]
    %v84 = vld [vmem:[%s0 + $0x238] sm:$0xff]
    %v85 = vld [vmem:[%s0 + $0x240] sm:$0xff]
    %v86 = vld [vmem:[%s0 + $0x248] sm:$0xff]
    %v87 = vld [vmem:[%s0 + $0x250] sm:$0xff]
    %v88 = vld [vmem:[%s0 + $0x258] sm:$0xff]
    %v89 = vld [vmem:[%s0 + $0x260] sm:$0xff]
    %v90 = vld [vmem:[%s0 + $0x268] sm:$0xff]
    %v91 = vld [vmem:[%s0 + $0x270] sm:$0xff]
    %v92 = vld [vmem:[%s0 + $0x278] sm:$0xff]
    %v93 = vld [vmem:[%s0 + $0x280] sm:$0xff]
    %v94 = vld [vmem:[%s1] sm:$0xff]
    %v95 = vld [vmem:[%s1 + $0x8] sm:$0xff]
    %v96 = vld [vmem:[%s1 + $0x10] sm:$0xff]
    %v97 = vld [vmem:[%s1 + $0x18] sm:$0x7]
    %v98 = vperm.slane %v12, 0
    %vm99 = vcmask 220160
    %v101 = vsel %vm99, %v13, 0
    %v104 = vsel %vm99, %v14, 0
    %v107 = vsel %vm99, %v15, 0
    %v110 = vsel %vm99, %v16, 0
    %v113 = vsel %vm99, %v17, 0
    %v116 = vsel %vm99, %v18, 0
    %v119 = vsel %vm99, %v19, 0
    %v122 = vsel %vm99, %v20, 0
    %v125 = vsel %vm99, %v21, 0
    %v128 = vsel %vm99, %v22, 0
    %v131 = vsel %vm99, %v23, 0
    %v134 = vsel %vm99, %v24, 0
    %v137 = vsel %vm99, %v25, 0
    %v140 = vsel %vm99, %v26, 0
    %v143 = vsel %vm99, %v27, 0
    %v146 = vsel %vm99, %v28, 0
    %v149 = vsel %vm99, %v29, 0
    %v152 = vsel %vm99, %v30, 0
    %v155 = vsel %vm99, %v31, 0
    %v158 = vsel %vm99, %v32, 0
    %v161 = vsel %vm99, %v33, 0
    %v164 = vsel %vm99, %v34, 0
    %v167 = vsel %vm99, %v35, 0
    %v170 = vsel %vm99, %v36, 0
    %v173 = vsel %vm99, %v37, 0
    %v176 = vsel %vm99, %v38, 0
    %v179 = vsel %vm99, %v39, 0
    %v182 = vsel %vm99, %v40, 0
    %v185 = vsel %vm99, %v41, 0
    %v188 = vsel %vm99, %v42, 0
    %v191 = vsel %vm99, %v43, 0
    %v194 = vsel %vm99, %v44, 0
    %v197 = vsel %vm99, %v45, 0
    %v200 = vsel %vm99, %v46, 0
    %v203 = vsel %vm99, %v47, 0
    %v206 = vsel %vm99, %v48, 0
    %v209 = vsel %vm99, %v49, 0
    %v212 = vsel %vm99, %v50, 0
    %v215 = vsel %vm99, %v51, 0
    %v218 = vsel %vm99, %v52, 0
    %v221 = vsel %vm99, %v53, 0
    %v224 = vsel %vm99, %v54, 0
    %v227 = vsel %vm99, %v55, 0
    %v230 = vsel %vm99, %v56, 0
    %v233 = vsel %vm99, %v57, 0
    %v236 = vsel %vm99, %v58, 0
    %v239 = vsel %vm99, %v59, 0
    %v242 = vsel %vm99, %v60, 0
    %v245 = vsel %vm99, %v61, 0
    %v248 = vsel %vm99, %v62, 0
    %v251 = vsel %vm99, %v63, 0
    %v254 = vsel %vm99, %v64, 0
    %v257 = vsel %vm99, %v65, 0
    %v260 = vsel %vm99, %v66, 0
    %v263 = vsel %vm99, %v67, 0
    %v266 = vsel %vm99, %v68, 0
    %v269 = vsel %vm99, %v69, 0
    %v272 = vsel %vm99, %v70, 0
    %v275 = vsel %vm99, %v71, 0
    %v278 = vsel %vm99, %v72, 0
    %v281 = vsel %vm99, %v73, 0
    %v284 = vsel %vm99, %v74, 0
    %v287 = vsel %vm99, %v75, 0
    %v290 = vsel %vm99, %v76, 0
    %v293 = vsel %vm99, %v77, 0
    %v296 = vsel %vm99, %v78, 0
    %v299 = vsel %vm99, %v79, 0
    %v302 = vsel %vm99, %v80, 0
    %v305 = vsel %vm99, %v81, 0
    %v308 = vsel %vm99, %v82, 0
    %v311 = vsel %vm99, %v83, 0
    %v314 = vsel %vm99, %v84, 0
    %v317 = vsel %vm99, %v85, 0
    %v320 = vsel %vm99, %v86, 0
    %v323 = vsel %vm99, %v87, 0
    %v326 = vsel %vm99, %v88, 0
    %v329 = vsel %vm99, %v89, 0
    %v332 = vsel %vm99, %v90, 0
    %v335 = vsel %vm99, %v91, 0
    %v338 = vsel %vm99, %v92, 0
    %v341 = vsel %vm99, %v93, 0
    %vm343 = vcmask 1042432
    %v345 = vsel %vm343, %v97, 0
    %347 = vmatpush.msra.mxu0 0.0
    %348 = vmatpush.msra.mxu0 0.0
    %349 = vmatpush.msra.mxu0 0.0
    %350 = vmatpush.msra.mxu0 0.0
    %351 = vmatpush.msra.mxu0 0.0
    %352 = vmatpush.msra.mxu0 0.0
    %353 = vmatpush.msra.mxu0 0.0
    %354 = vmatpush.msra.mxu0 0.0
    %355 = vmatpush.msra.mxu0 0.0
    %356 = vmatpush.msra.mxu0 0.0
    %357 = vmatpush.msra.mxu0 0.0
    %358 = vmatpush.msra.mxu0 0.0
    %359 = vmatpush.msra.mxu0 %v345
    %360 = vmatpush.msra.mxu0 %v96
    %361 = vmatpush.msra.mxu0 %v95
    %362 = vmatpush.msra.mxu0 %v94
    %363 = vmatmul.f32.gmra.mxu0 %v101
    %v364 = vpop.f32.mrf.mxu0
    %v365 = vadd.f32 %v98, %v364
    %366 = vmatmul.f32.gmra.mxu0 %v104
    %v367 = vpop.f32.mrf.mxu0
    %v368 = vadd.f32 %v98, %v367
    %369 = vmatmul.f32.gmra.mxu0 %v107
    %v370 = vpop.f32.mrf.mxu0
    %v371 = vadd.f32 %v98, %v370
    %372 = vmatmul.f32.gmra.mxu0 %v110
    %v373 = vpop.f32.mrf.mxu0
    %v374 = vadd.f32 %v98, %v373
    %375 = vmatmul.f32.gmra.mxu0 %v113
    %v376 = vpop.f32.mrf.mxu0
    %v377 = vadd.f32 %v98, %v376
    %378 = vmatmul.f32.gmra.mxu0 %v116
    %v379 = vpop.f32.mrf.mxu0
    %v380 = vadd.f32 %v98, %v379
    %381 = vmatmul.f32.gmra.mxu0 %v119
    %v382 = vpop.f32.mrf.mxu0
    %v383 = vadd.f32 %v98, %v382
    %384 = vmatmul.f32.gmra.mxu0 %v122
    %v385 = vpop.f32.mrf.mxu0
    %v386 = vadd.f32 %v98, %v385
    %387 = vmatmul.f32.gmra.mxu0 %v125
    %v388 = vpop.f32.mrf.mxu0
    %v389 = vadd.f32 %v98, %v388
    %390 = vmatmul.f32.gmra.mxu0 %v128
    %v391 = vpop.f32.mrf.mxu0
    %v392 = vadd.f32 %v98, %v391
    %393 = vmatmul.f32.gmra.mxu0 %v131
    %v394 = vpop.f32.mrf.mxu0
    %v395 = vadd.f32 %v98, %v394
    %396 = vmatmul.f32.gmra.mxu0 %v134
    %v397 = vpop.f32.mrf.mxu0
    %v398 = vadd.f32 %v98, %v397
    %399 = vmatmul.f32.gmra.mxu0 %v137
    %v400 = vpop.f32.mrf.mxu0
    %v401 = vadd.f32 %v98, %v400
    %402 = vmatmul.f32.gmra.mxu0 %v140
    %v403 = vpop.f32.mrf.mxu0
    %v404 = vadd.f32 %v98, %v403
    %405 = vmatmul.f32.gmra.mxu0 %v143
    %v406 = vpop.f32.mrf.mxu0
    %v407 = vadd.f32 %v98, %v406
    %408 = vmatmul.f32.gmra.mxu0 %v146
    %v409 = vpop.f32.mrf.mxu0
    %v410 = vadd.f32 %v98, %v409
    %411 = vmatmul.f32.gmra.mxu0 %v149
    %v412 = vpop.f32.mrf.mxu0
    %v413 = vadd.f32 %v98, %v412
    %414 = vmatmul.f32.gmra.mxu0 %v152
    %v415 = vpop.f32.mrf.mxu0
    %v416 = vadd.f32 %v98, %v415
    %417 = vmatmul.f32.gmra.mxu0 %v155
    %v418 = vpop.f32.mrf.mxu0
    %v419 = vadd.f32 %v98, %v418
    %420 = vmatmul.f32.gmra.mxu0 %v158
    %v421 = vpop.f32.mrf.mxu0
    %v422 = vadd.f32 %v98, %v421
    %423 = vmatmul.f32.gmra.mxu0 %v161
    %v424 = vpop.f32.mrf.mxu0
    %v425 = vadd.f32 %v98, %v424
    %426 = vmatmul.f32.gmra.mxu0 %v164
    %v427 = vpop.f32.mrf.mxu0
    %v428 = vadd.f32 %v98, %v427
    %429 = vmatmul.f32.gmra.mxu0 %v167
    %v430 = vpop.f32.mrf.mxu0
    %v431 = vadd.f32 %v98, %v430
    %432 = vmatmul.f32.gmra.mxu0 %v170
    %v433 = vpop.f32.mrf.mxu0
    %v434 = vadd.f32 %v98, %v433
    %435 = vmatmul.f32.gmra.mxu0 %v173
    %v436 = vpop.f32.mrf.mxu0
    %v437 = vadd.f32 %v98, %v436
    %438 = vmatmul.f32.gmra.mxu0 %v176
    %v439 = vpop.f32.mrf.mxu0
    %v440 = vadd.f32 %v98, %v439
    %441 = vmatmul.f32.gmra.mxu0 %v179
    %v442 = vpop.f32.mrf.mxu0
    %v443 = vadd.f32 %v98, %v442
    %444 = vmatmul.f32.gmra.mxu0 %v182
    %v445 = vpop.f32.mrf.mxu0
    %v446 = vadd.f32 %v98, %v445
    %447 = vmatmul.f32.gmra.mxu0 %v185
    %v448 = vpop.f32.mrf.mxu0
    %v449 = vadd.f32 %v98, %v448
    %450 = vmatmul.f32.gmra.mxu0 %v188
    %v451 = vpop.f32.mrf.mxu0
    %v452 = vadd.f32 %v98, %v451
    %453 = vmatmul.f32.gmra.mxu0 %v191
    %v454 = vpop.f32.mrf.mxu0
    %v455 = vadd.f32 %v98, %v454
    %456 = vmatmul.f32.gmra.mxu0 %v194
    %v457 = vpop.f32.mrf.mxu0
    %v458 = vadd.f32 %v98, %v457
    %459 = vmatmul.f32.gmra.mxu0 %v197
    %v460 = vpop.f32.mrf.mxu0
    %v461 = vadd.f32 %v98, %v460
    %462 = vmatmul.f32.gmra.mxu0 %v200
    %v463 = vpop.f32.mrf.mxu0
    %v464 = vadd.f32 %v98, %v463
    %465 = vmatmul.f32.gmra.mxu0 %v203
    %v466 = vpop.f32.mrf.mxu0
    %v467 = vadd.f32 %v98, %v466
    %468 = vmatmul.f32.gmra.mxu0 %v206
    %v469 = vpop.f32.mrf.mxu0
    %v470 = vadd.f32 %v98, %v469
    %471 = vmatmul.f32.gmra.mxu0 %v209
    %v472 = vpop.f32.mrf.mxu0
    %v473 = vadd.f32 %v98, %v472
    %474 = vmatmul.f32.gmra.mxu0 %v212
    %v475 = vpop.f32.mrf.mxu0
    %v476 = vadd.f32 %v98, %v475
    %477 = vmatmul.f32.gmra.mxu0 %v215
    %v478 = vpop.f32.mrf.mxu0
    %v479 = vadd.f32 %v98, %v478
    %480 = vmatmul.f32.gmra.mxu0 %v218
    %v481 = vpop.f32.mrf.mxu0
    %v482 = vadd.f32 %v98, %v481
    %483 = vmatmul.f32.gmra.mxu0 %v221
    %v484 = vpop.f32.mrf.mxu0
    %v485 = vadd.f32 %v98, %v484
    %486 = vmatmul.f32.gmra.mxu0 %v224
    %v487 = vpop.f32.mrf.mxu0
    %v488 = vadd.f32 %v98, %v487
    %489 = vmatmul.f32.gmra.mxu0 %v227
    %v490 = vpop.f32.mrf.mxu0
    %v491 = vadd.f32 %v98, %v490
    %492 = vmatmul.f32.gmra.mxu0 %v230
    %v493 = vpop.f32.mrf.mxu0
    %v494 = vadd.f32 %v98, %v493
    %495 = vmatmul.f32.gmra.mxu0 %v233
    %v496 = vpop.f32.mrf.mxu0
    %v497 = vadd.f32 %v98, %v496
    %498 = vmatmul.f32.gmra.mxu0 %v236
    %v499 = vpop.f32.mrf.mxu0
    %v500 = vadd.f32 %v98, %v499
    %501 = vmatmul.f32.gmra.mxu0 %v239
    %v502 = vpop.f32.mrf.mxu0
    %v503 = vadd.f32 %v98, %v502
    %504 = vmatmul.f32.gmra.mxu0 %v242
    %v505 = vpop.f32.mrf.mxu0
    %v506 = vadd.f32 %v98, %v505
    %507 = vmatmul.f32.gmra.mxu0 %v245
    %v508 = vpop.f32.mrf.mxu0
    %v509 = vadd.f32 %v98, %v508
    %510 = vmatmul.f32.gmra.mxu0 %v248
    %v511 = vpop.f32.mrf.mxu0
    %v512 = vadd.f32 %v98, %v511
    %513 = vmatmul.f32.gmra.mxu0 %v251
    %v514 = vpop.f32.mrf.mxu0
    %v515 = vadd.f32 %v98, %v514
    %516 = vmatmul.f32.gmra.mxu0 %v254
    %v517 = vpop.f32.mrf.mxu0
    %v518 = vadd.f32 %v98, %v517
    %519 = vmatmul.f32.gmra.mxu0 %v257
    %v520 = vpop.f32.mrf.mxu0
    %v521 = vadd.f32 %v98, %v520
    %522 = vmatmul.f32.gmra.mxu0 %v260
    %v523 = vpop.f32.mrf.mxu0
    %v524 = vadd.f32 %v98, %v523
    %525 = vmatmul.f32.gmra.mxu0 %v263
    %v526 = vpop.f32.mrf.mxu0
    %v527 = vadd.f32 %v98, %v526
    %528 = vmatmul.f32.gmra.mxu0 %v266
    %v529 = vpop.f32.mrf.mxu0
    %v530 = vadd.f32 %v98, %v529
    %531 = vmatmul.f32.gmra.mxu0 %v269
    %v532 = vpop.f32.mrf.mxu0
    %v533 = vadd.f32 %v98, %v532
    %534 = vmatmul.f32.gmra.mxu0 %v272
    %v535 = vpop.f32.mrf.mxu0
    %v536 = vadd.f32 %v98, %v535
    %537 = vmatmul.f32.gmra.mxu0 %v275
    %v538 = vpop.f32.mrf.mxu0
    %v539 = vadd.f32 %v98, %v538
    %540 = vmatmul.f32.gmra.mxu0 %v278
    %v541 = vpop.f32.mrf.mxu0
    %v542 = vadd.f32 %v98, %v541
    %543 = vmatmul.f32.gmra.mxu0 %v281
    %v544 = vpop.f32.mrf.mxu0
    %v545 = vadd.f32 %v98, %v544
    %546 = vmatmul.f32.gmra.mxu0 %v284
    %v547 = vpop.f32.mrf.mxu0
    %v548 = vadd.f32 %v98, %v547
    %549 = vmatmul.f32.gmra.mxu0 %v287
    %v550 = vpop.f32.mrf.mxu0
    %v551 = vadd.f32 %v98, %v550
    %552 = vmatmul.f32.gmra.mxu0 %v290
    %v553 = vpop.f32.mrf.mxu0
    %v554 = vadd.f32 %v98, %v553
    %555 = vmatmul.f32.gmra.mxu0 %v293
    %v556 = vpop.f32.mrf.mxu0
    %v557 = vadd.f32 %v98, %v556
    %558 = vmatmul.f32.gmra.mxu0 %v296
    %v559 = vpop.f32.mrf.mxu0
    %v560 = vadd.f32 %v98, %v559
    %561 = vmatmul.f32.gmra.mxu0 %v299
    %v562 = vpop.f32.mrf.mxu0
    %v563 = vadd.f32 %v98, %v562
    %564 = vmatmul.f32.gmra.mxu0 %v302
    %v565 = vpop.f32.mrf.mxu0
    %v566 = vadd.f32 %v98, %v565
    %567 = vmatmul.f32.gmra.mxu0 %v305
    %v568 = vpop.f32.mrf.mxu0
    %v569 = vadd.f32 %v98, %v568
    %570 = vmatmul.f32.gmra.mxu0 %v308
    %v571 = vpop.f32.mrf.mxu0
    %v572 = vadd.f32 %v98, %v571
    %573 = vmatmul.f32.gmra.mxu0 %v311
    %v574 = vpop.f32.mrf.mxu0
    %v575 = vadd.f32 %v98, %v574
    %576 = vmatmul.f32.gmra.mxu0 %v314
    %v577 = vpop.f32.mrf.mxu0
    %v578 = vadd.f32 %v98, %v577
    %579 = vmatmul.f32.gmra.mxu0 %v317
    %v580 = vpop.f32.mrf.mxu0
    %v581 = vadd.f32 %v98, %v580
    %582 = vmatmul.f32.gmra.mxu0 %v320
    %v583 = vpop.f32.mrf.mxu0
    %v584 = vadd.f32 %v98, %v583
    %585 = vmatmul.f32.gmra.mxu0 %v323
    %v586 = vpop.f32.mrf.mxu0
    %v587 = vadd.f32 %v98, %v586
    %588 = vmatmul.f32.gmra.mxu0 %v326
    %v589 = vpop.f32.mrf.mxu0
    %v590 = vadd.f32 %v98, %v589
    %591 = vmatmul.f32.gmra.mxu0 %v329
    %v592 = vpop.f32.mrf.mxu0
    %v593 = vadd.f32 %v98, %v592
    %594 = vmatmul.f32.gmra.mxu0 %v332
    %v595 = vpop.f32.mrf.mxu0
    %v596 = vadd.f32 %v98, %v595
    %597 = vmatmul.f32.gmra.mxu0 %v335
    %v598 = vpop.f32.mrf.mxu0
    %v599 = vadd.f32 %v98, %v598
    %600 = vmatmul.f32.gmra.mxu0 %v338
    %v601 = vpop.f32.mrf.mxu0
    %v602 = vadd.f32 %v98, %v601
    %603 = vmatmul.f32.gmra.mxu0 %v341
    %v604 = vpop.f32.mrf.mxu0
    %v605 = vadd.f32 %v98, %v604
    %606 = vdwg.mxu0
    %v607 = vmax.f32 %v365, 0.0
    %v608 = vmax.f32 %v368, 0.0
    %v609 = vmax.f32 %v371, 0.0
    %v610 = vmax.f32 %v374, 0.0
    %v611 = vmax.f32 %v377, 0.0
    %v612 = vmax.f32 %v380, 0.0
    %v613 = vmax.f32 %v383, 0.0
    %v614 = vmax.f32 %v386, 0.0
    %v615 = vmax.f32 %v389, 0.0
    %v616 = vmax.f32 %v392, 0.0
    %v617 = vmax.f32 %v395, 0.0
    %v618 = vmax.f32 %v398, 0.0
    %v619 = vmax.f32 %v401, 0.0
    %v620 = vmax.f32 %v404, 0.0
    %v621 = vmax.f32 %v407, 0.0
    %v622 = vmax.f32 %v410, 0.0
    %v623 = vmax.f32 %v413, 0.0
    %v624 = vmax.f32 %v416, 0.0
    %v625 = vmax.f32 %v419, 0.0
    %v626 = vmax.f32 %v422, 0.0
    %v627 = vmax.f32 %v425, 0.0
    %v628 = vmax.f32 %v428, 0.0
    %v629 = vmax.f32 %v431, 0.0
    %v630 = vmax.f32 %v434, 0.0
    %v631 = vmax.f32 %v437, 0.0
    %v632 = vmax.f32 %v440, 0.0
    %v633 = vmax.f32 %v443, 0.0
    %v634 = vmax.f32 %v446, 0.0
    %v635 = vmax.f32 %v449, 0.0
    %v636 = vmax.f32 %v452, 0.0
    %v637 = vmax.f32 %v455, 0.0
    %v638 = vmax.f32 %v458, 0.0
    %v639 = vmax.f32 %v461, 0.0
    %v640 = vmax.f32 %v464, 0.0
    %v641 = vmax.f32 %v467, 0.0
    %v642 = vmax.f32 %v470, 0.0
    %v643 = vmax.f32 %v473, 0.0
    %v644 = vmax.f32 %v476, 0.0
    %v645 = vmax.f32 %v479, 0.0
    %v646 = vmax.f32 %v482, 0.0
    %v647 = vmax.f32 %v485, 0.0
    %v648 = vmax.f32 %v488, 0.0
    %v649 = vmax.f32 %v491, 0.0
    %v650 = vmax.f32 %v494, 0.0
    %v651 = vmax.f32 %v497, 0.0
    %v652 = vmax.f32 %v500, 0.0
    %v653 = vmax.f32 %v503, 0.0
    %v654 = vmax.f32 %v506, 0.0
    %v655 = vmax.f32 %v509, 0.0
    %v656 = vmax.f32 %v512, 0.0
    %v657 = vmax.f32 %v515, 0.0
    %v658 = vmax.f32 %v518, 0.0
    %v659 = vmax.f32 %v521, 0.0
    %v660 = vmax.f32 %v524, 0.0
    %v661 = vmax.f32 %v527, 0.0
    %v662 = vmax.f32 %v530, 0.0
    %v663 = vmax.f32 %v533, 0.0
    %v664 = vmax.f32 %v536, 0.0
    %v665 = vmax.f32 %v539, 0.0
    %v666 = vmax.f32 %v542, 0.0
    %v667 = vmax.f32 %v545, 0.0
    %v668 = vmax.f32 %v548, 0.0
    %v669 = vmax.f32 %v551, 0.0
    %v670 = vmax.f32 %v554, 0.0
    %v671 = vmax.f32 %v557, 0.0
    %v672 = vmax.f32 %v560, 0.0
    %v673 = vmax.f32 %v563, 0.0
    %v674 = vmax.f32 %v566, 0.0
    %v675 = vmax.f32 %v569, 0.0
    %v676 = vmax.f32 %v572, 0.0
    %v677 = vmax.f32 %v575, 0.0
    %v678 = vmax.f32 %v578, 0.0
    %v679 = vmax.f32 %v581, 0.0
    %v680 = vmax.f32 %v584, 0.0
    %v681 = vmax.f32 %v587, 0.0
    %v682 = vmax.f32 %v590, 0.0
    %v683 = vmax.f32 %v593, 0.0
    %v684 = vmax.f32 %v596, 0.0
    %v685 = vmax.f32 %v599, 0.0
    %v686 = vmax.f32 %v602, 0.0
    %v687 = vmax.f32 %v605, 0.0
    %v688 = vld [vmem:[%s1 + $0x20] sm:$0xff]
    %v689 = vld [vmem:[%s1 + $0x28] sm:$0xff]
    %v690 = vld [vmem:[%s1 + $0x30] sm:$0xff]
    %v691 = vld [vmem:[%s1 + $0x38] sm:$0xff]
    %vm692 = vcmask 130048
    %v694 = vsel %vm692, %v616, 0
    %v697 = vsel %vm692, %v617, 0
    %v700 = vsel %vm692, %v618, 0
    %v703 = vsel %vm692, %v619, 0
    %v706 = vsel %vm692, %v620, 0
    %v709 = vsel %vm692, %v621, 0
    %v712 = vsel %vm692, %v622, 0
    %v715 = vsel %vm692, %v623, 0
    %v718 = vsel %vm692, %v624, 0
    %720 = vmatpush.msra.mxu0 0.0
    %721 = vmatpush.msra.mxu0 0.0
    %722 = vmatpush.msra.mxu0 0.0
    %723 = vmatpush.msra.mxu0 0.0
    %724 = vmatpush.msra.mxu0 0.0
    %725 = vmatpush.msra.mxu0 0.0
    %726 = vmatpush.msra.mxu0 0.0
    %727 = vmatpush.msra.mxu0 0.0
    %728 = vmatpush.msra.mxu0 0.0
    %729 = vmatpush.msra.mxu0 0.0
    %730 = vmatpush.msra.mxu0 0.0
    %731 = vmatpush.msra.mxu0 0.0
    %732 = vmatpush.msra.mxu0 0.0
    %733 = vmatpush.msra.mxu0 0.0
    %734 = vmatpush.msra.mxu0 %v691
    %735 = vmatpush.msra.mxu0 %v690
    %736 = vmatmul.f32.gmra.mxu0 %v694
    %v737 = vpop.f32.mrf.mxu0
    %v738 = vadd.f32 0.0, %v737
    %739 = vmatmul.f32.gmra.mxu0 %v697
    %v740 = vpop.f32.mrf.mxu0
    %v741 = vadd.f32 0.0, %v740
    %742 = vmatmul.f32.gmra.mxu0 %v700
    %v743 = vpop.f32.mrf.mxu0
    %v744 = vadd.f32 0.0, %v743
    %745 = vmatmul.f32.gmra.mxu0 %v703
    %v746 = vpop.f32.mrf.mxu0
    %v747 = vadd.f32 0.0, %v746
    %748 = vmatmul.f32.gmra.mxu0 %v706
    %v749 = vpop.f32.mrf.mxu0
    %v750 = vadd.f32 0.0, %v749
    %751 = vmatmul.f32.gmra.mxu0 %v709
    %v752 = vpop.f32.mrf.mxu0
    %v753 = vadd.f32 0.0, %v752
    %754 = vmatmul.f32.gmra.mxu0 %v712
    %v755 = vpop.f32.mrf.mxu0
    %v756 = vadd.f32 0.0, %v755
    %757 = vmatmul.f32.gmra.mxu0 %v715
    %v758 = vpop.f32.mrf.mxu0
    %v759 = vadd.f32 0.0, %v758
    %760 = vmatmul.f32.gmra.mxu0 %v718
    %v761 = vpop.f32.mrf.mxu0
    %v762 = vadd.f32 0.0, %v761
    %763 = vdwg.mxu0
    %v765 = vsel %vm692, %v607, 0
    %v768 = vsel %vm692, %v608, 0
    %v771 = vsel %vm692, %v609, 0
    %v774 = vsel %vm692, %v610, 0
    %v777 = vsel %vm692, %v611, 0
    %v780 = vsel %vm692, %v612, 0
    %v783 = vsel %vm692, %v613, 0
    %v786 = vsel %vm692, %v614, 0
    %v789 = vsel %vm692, %v615, 0
    %791 = vmatpush.msra.mxu0 0.0
    %792 = vmatpush.msra.mxu0 0.0
    %793 = vmatpush.msra.mxu0 0.0
    %794 = vmatpush.msra.mxu0 0.0
    %795 = vmatpush.msra.mxu0 0.0
    %796 = vmatpush.msra.mxu0 0.0
    %797 = vmatpush.msra.mxu0 0.0
    %798 = vmatpush.msra.mxu0 0.0
    %799 = vmatpush.msra.mxu0 0.0
    %800 = vmatpush.msra.mxu0 0.0
    %801 = vmatpush.msra.mxu0 0.0
    %802 = vmatpush.msra.mxu0 0.0
    %803 = vmatpush.msra.mxu0 0.0
    %804 = vmatpush.msra.mxu0 0.0
    %805 = vmatpush.msra.mxu0 %v689
    %806 = vmatpush.msra.mxu0 %v688
    %807 = vmatmul.f32.gmra.mxu0 %v765
    %v808 = vpop.f32.mrf.mxu0
    %v809 = vadd.f32 %v738, %v808
    %810 = vmatmul.f32.gmra.mxu0 %v768
    %v811 = vpop.f32.mrf.mxu0
    %v812 = vadd.f32 %v741, %v811
    %813 = vmatmul.f32.gmra.mxu0 %v771
    %v814 = vpop.f32.mrf.mxu0
    %v815 = vadd.f32 %v744, %v814
    %816 = vmatmul.f32.gmra.mxu0 %v774
    %v817 = vpop.f32.mrf.mxu0
    %v818 = vadd.f32 %v747, %v817
    %819 = vmatmul.f32.gmra.mxu0 %v777
    %v820 = vpop.f32.mrf.mxu0
    %v821 = vadd.f32 %v750, %v820
    %822 = vmatmul.f32.gmra.mxu0 %v780
    %v823 = vpop.f32.mrf.mxu0
    %v824 = vadd.f32 %v753, %v823
    %825 = vmatmul.f32.gmra.mxu0 %v783
    %v826 = vpop.f32.mrf.mxu0
    %v827 = vadd.f32 %v756, %v826
    %828 = vmatmul.f32.gmra.mxu0 %v786
    %v829 = vpop.f32.mrf.mxu0
    %v830 = vadd.f32 %v759, %v829
    %831 = vmatmul.f32.gmra.mxu0 %v789
    %v832 = vpop.f32.mrf.mxu0
    %v833 = vadd.f32 %v762, %v832
    %834 = vdwg.mxu0
    %v835 = vld [vmem:[%s1 + $0x40] sm:$0xff]
    %v836 = vld [vmem:[%s1 + $0x48] sm:$0xff]
    %v837 = vld [vmem:[%s1 + $0x50] sm:$0xff]
    %v838 = vld [vmem:[%s1 + $0x58] sm:$0xff]
    %v840 = vsel %vm692, %v634, 0
    %v843 = vsel %vm692, %v635, 0
    %v846 = vsel %vm692, %v636, 0
    %v849 = vsel %vm692, %v637, 0
    %v852 = vsel %vm692, %v638, 0
    %v855 = vsel %vm692, %v639, 0
    %v858 = vsel %vm692, %v640, 0
    %v861 = vsel %vm692, %v641, 0
    %v864 = vsel %vm692, %v642, 0
    %866 = vmatpush.msra.mxu0 0.0
    %867 = vmatpush.msra.mxu0 0.0
    %868 = vmatpush.msra.mxu0 0.0
    %869 = vmatpush.msra.mxu0 0.0
    %870 = vmatpush.msra.mxu0 0.0
    %871 = vmatpush.msra.mxu0 0.0
    %872 = vmatpush.msra.mxu0 0.0
    %873 = vmatpush.msra.mxu0 0.0
    %874 = vmatpush.msra.mxu0 0.0
    %875 = vmatpush.msra.mxu0 0.0
    %876 = vmatpush.msra.mxu0 0.0
    %877 = vmatpush.msra.mxu0 0.0
    %878 = vmatpush.msra.mxu0 0.0
    %879 = vmatpush.msra.mxu0 0.0
    %880 = vmatpush.msra.mxu0 %v838
    %881 = vmatpush.msra.mxu0 %v837
    %882 = vmatmul.f32.gmra.mxu0 %v840
    %v883 = vpop.f32.mrf.mxu0
    %v884 = vadd.f32 0.0, %v883
    %885 = vmatmul.f32.gmra.mxu0 %v843
    %v886 = vpop.f32.mrf.mxu0
    %v887 = vadd.f32 0.0, %v886
    %888 = vmatmul.f32.gmra.mxu0 %v846
    %v889 = vpop.f32.mrf.mxu0
    %v890 = vadd.f32 0.0, %v889
    %891 = vmatmul.f32.gmra.mxu0 %v849
    %v892 = vpop.f32.mrf.mxu0
    %v893 = vadd.f32 0.0, %v892
    %894 = vmatmul.f32.gmra.mxu0 %v852
    %v895 = vpop.f32.mrf.mxu0
    %v896 = vadd.f32 0.0, %v895
    %897 = vmatmul.f32.gmra.mxu0 %v855
    %v898 = vpop.f32.mrf.mxu0
    %v899 = vadd.f32 0.0, %v898
    %900 = vmatmul.f32.gmra.mxu0 %v858
    %v901 = vpop.f32.mrf.mxu0
    %v902 = vadd.f32 0.0, %v901
    %903 = vmatmul.f32.gmra.mxu0 %v861
    %v904 = vpop.f32.mrf.mxu0
    %v905 = vadd.f32 0.0, %v904
    %906 = vmatmul.f32.gmra.mxu0 %v864
    %v907 = vpop.f32.mrf.mxu0
    %v908 = vadd.f32 0.0, %v907
    %909 = vdwg.mxu0
    %v911 = vsel %vm692, %v625, 0
    %v914 = vsel %vm692, %v626, 0
    %v917 = vsel %vm692, %v627, 0
    %v920 = vsel %vm692, %v628, 0
    %v923 = vsel %vm692, %v629, 0
    %v926 = vsel %vm692, %v630, 0
    %v929 = vsel %vm692, %v631, 0
    %v932 = vsel %vm692, %v632, 0
    %v935 = vsel %vm692, %v633, 0
    %937 = vmatpush.msra.mxu0 0.0
    %938 = vmatpush.msra.mxu0 0.0
    %939 = vmatpush.msra.mxu0 0.0
    %940 = vmatpush.msra.mxu0 0.0
    %941 = vmatpush.msra.mxu0 0.0
    %942 = vmatpush.msra.mxu0 0.0
    %943 = vmatpush.msra.mxu0 0.0
    %944 = vmatpush.msra.mxu0 0.0
    %945 = vmatpush.msra.mxu0 0.0
    %946 = vmatpush.msra.mxu0 0.0
    %947 = vmatpush.msra.mxu0 0.0
    %948 = vmatpush.msra.mxu0 0.0
    %949 = vmatpush.msra.mxu0 0.0
    %950 = vmatpush.msra.mxu0 0.0
    %951 = vmatpush.msra.mxu0 %v836
    %952 = vmatpush.msra.mxu0 %v835
    %953 = vmatmul.f32.gmra.mxu0 %v911
    %v954 = vpop.f32.mrf.mxu0
    %v955 = vadd.f32 %v884, %v954
    %956 = vmatmul.f32.gmra.mxu0 %v914
    %v957 = vpop.f32.mrf.mxu0
    %v958 = vadd.f32 %v887, %v957
    %959 = vmatmul.f32.gmra.mxu0 %v917
    %v960 = vpop.f32.mrf.mxu0
    %v961 = vadd.f32 %v890, %v960
    %962 = vmatmul.f32.gmra.mxu0 %v920
    %v963 = vpop.f32.mrf.mxu0
    %v964 = vadd.f32 %v893, %v963
    %965 = vmatmul.f32.gmra.mxu0 %v923
    %v966 = vpop.f32.mrf.mxu0
    %v967 = vadd.f32 %v896, %v966
    %968 = vmatmul.f32.gmra.mxu0 %v926
    %v969 = vpop.f32.mrf.mxu0
    %v970 = vadd.f32 %v899, %v969
    %971 = vmatmul.f32.gmra.mxu0 %v929
    %v972 = vpop.f32.mrf.mxu0
    %v973 = vadd.f32 %v902, %v972
    %974 = vmatmul.f32.gmra.mxu0 %v932
    %v975 = vpop.f32.mrf.mxu0
    %v976 = vadd.f32 %v905, %v975
    %977 = vmatmul.f32.gmra.mxu0 %v935
    %v978 = vpop.f32.mrf.mxu0
    %v979 = vadd.f32 %v908, %v978
    %980 = vdwg.mxu0
    %v981 = vld [vmem:[%s1 + $0x60] sm:$0xff]
    %v982 = vld [vmem:[%s1 + $0x68] sm:$0xff]
    %v983 = vld [vmem:[%s1 + $0x70] sm:$0xff]
    %v984 = vld [vmem:[%s1 + $0x78] sm:$0xff]
    %v986 = vsel %vm692, %v652, 0
    %v989 = vsel %vm692, %v653, 0
    %v992 = vsel %vm692, %v654, 0
    %v995 = vsel %vm692, %v655, 0
    %v998 = vsel %vm692, %v656, 0
    %v1001 = vsel %vm692, %v657, 0
    %v1004 = vsel %vm692, %v658, 0
    %v1007 = vsel %vm692, %v659, 0
    %v1010 = vsel %vm692, %v660, 0
    %1012 = vmatpush.msra.mxu0 0.0
    %1013 = vmatpush.msra.mxu0 0.0
    %1014 = vmatpush.msra.mxu0 0.0
    %1015 = vmatpush.msra.mxu0 0.0
    %1016 = vmatpush.msra.mxu0 0.0
    %1017 = vmatpush.msra.mxu0 0.0
    %1018 = vmatpush.msra.mxu0 0.0
    %1019 = vmatpush.msra.mxu0 0.0
    %1020 = vmatpush.msra.mxu0 0.0
    %1021 = vmatpush.msra.mxu0 0.0
    %1022 = vmatpush.msra.mxu0 0.0
    %1023 = vmatpush.msra.mxu0 0.0
    %1024 = vmatpush.msra.mxu0 0.0
    %1025 = vmatpush.msra.mxu0 0.0
    %1026 = vmatpush.msra.mxu0 %v984
    %1027 = vmatpush.msra.mxu0 %v983
    %1028 = vmatmul.f32.gmra.mxu0 %v986
    %v1029 = vpop.f32.mrf.mxu0
    %v1030 = vadd.f32 0.0, %v1029
    %1031 = vmatmul.f32.gmra.mxu0 %v989
    %v1032 = vpop.f32.mrf.mxu0
    %v1033 = vadd.f32 0.0, %v1032
    %1034 = vmatmul.f32.gmra.mxu0 %v992
    %v1035 = vpop.f32.mrf.mxu0
    %v1036 = vadd.f32 0.0, %v1035
    %1037 = vmatmul.f32.gmra.mxu0 %v995
    %v1038 = vpop.f32.mrf.mxu0
    %v1039 = vadd.f32 0.0, %v1038
    %1040 = vmatmul.f32.gmra.mxu0 %v998
    %v1041 = vpop.f32.mrf.mxu0
    %v1042 = vadd.f32 0.0, %v1041
    %1043 = vmatmul.f32.gmra.mxu0 %v1001
    %v1044 = vpop.f32.mrf.mxu0
    %v1045 = vadd.f32 0.0, %v1044
    %1046 = vmatmul.f32.gmra.mxu0 %v1004
    %v1047 = vpop.f32.mrf.mxu0
    %v1048 = vadd.f32 0.0, %v1047
    %1049 = vmatmul.f32.gmra.mxu0 %v1007
    %v1050 = vpop.f32.mrf.mxu0
    %v1051 = vadd.f32 0.0, %v1050
    %1052 = vmatmul.f32.gmra.mxu0 %v1010
    %v1053 = vpop.f32.mrf.mxu0
    %v1054 = vadd.f32 0.0, %v1053
    %1055 = vdwg.mxu0
    %v1057 = vsel %vm692, %v643, 0
    %v1060 = vsel %vm692, %v644, 0
    %v1063 = vsel %vm692, %v645, 0
    %v1066 = vsel %vm692, %v646, 0
    %v1069 = vsel %vm692, %v647, 0
    %v1072 = vsel %vm692, %v648, 0
    %v1075 = vsel %vm692, %v649, 0
    %v1078 = vsel %vm692, %v650, 0
    %v1081 = vsel %vm692, %v651, 0
    %1083 = vmatpush.msra.mxu0 0.0
    %1084 = vmatpush.msra.mxu0 0.0
    %1085 = vmatpush.msra.mxu0 0.0
    %1086 = vmatpush.msra.mxu0 0.0
    %1087 = vmatpush.msra.mxu0 0.0
    %1088 = vmatpush.msra.mxu0 0.0
    %1089 = vmatpush.msra.mxu0 0.0
    %1090 = vmatpush.msra.mxu0 0.0
    %1091 = vmatpush.msra.mxu0 0.0
    %1092 = vmatpush.msra.mxu0 0.0
    %1093 = vmatpush.msra.mxu0 0.0
    %1094 = vmatpush.msra.mxu0 0.0
    %1095 = vmatpush.msra.mxu0 0.0
    %1096 = vmatpush.msra.mxu0 0.0
    %1097 = vmatpush.msra.mxu0 %v982
    %1098 = vmatpush.msra.mxu0 %v981
    %1099 = vmatmul.f32.gmra.mxu0 %v1057
    %v1100 = vpop.f32.mrf.mxu0
    %v1101 = vadd.f32 %v1030, %v1100
    %1102 = vmatmul.f32.gmra.mxu0 %v1060
    %v1103 = vpop.f32.mrf.mxu0
    %v1104 = vadd.f32 %v1033, %v1103
    %1105 = vmatmul.f32.gmra.mxu0 %v1063
    %v1106 = vpop.f32.mrf.mxu0
    %v1107 = vadd.f32 %v1036, %v1106
    %1108 = vmatmul.f32.gmra.mxu0 %v1066
    %v1109 = vpop.f32.mrf.mxu0
    %v1110 = vadd.f32 %v1039, %v1109
    %1111 = vmatmul.f32.gmra.mxu0 %v1069
    %v1112 = vpop.f32.mrf.mxu0
    %v1113 = vadd.f32 %v1042, %v1112
    %1114 = vmatmul.f32.gmra.mxu0 %v1072
    %v1115 = vpop.f32.mrf.mxu0
    %v1116 = vadd.f32 %v1045, %v1115
    %1117 = vmatmul.f32.gmra.mxu0 %v1075
    %v1118 = vpop.f32.mrf.mxu0
    %v1119 = vadd.f32 %v1048, %v1118
    %1120 = vmatmul.f32.gmra.mxu0 %v1078
    %v1121 = vpop.f32.mrf.mxu0
    %v1122 = vadd.f32 %v1051, %v1121
    %1123 = vmatmul.f32.gmra.mxu0 %v1081
    %v1124 = vpop.f32.mrf.mxu0
    %v1125 = vadd.f32 %v1054, %v1124
    %1126 = vdwg.mxu0
    %v1127 = vld [vmem:[%s1 + $0x80] sm:$0xff]
    %v1128 = vld [vmem:[%s1 + $0x88] sm:$0xff]
    %v1129 = vld [vmem:[%s1 + $0x90] sm:$0xff]
    %v1130 = vld [vmem:[%s1 + $0x98] sm:$0xff]
    %v1132 = vsel %vm692, %v670, 0
    %v1135 = vsel %vm692, %v671, 0
    %v1138 = vsel %vm692, %v672, 0
    %v1141 = vsel %vm692, %v673, 0
    %v1144 = vsel %vm692, %v674, 0
    %v1147 = vsel %vm692, %v675, 0
    %v1150 = vsel %vm692, %v676, 0
    %v1153 = vsel %vm692, %v677, 0
    %v1156 = vsel %vm692, %v678, 0
    %1158 = vmatpush.msra.mxu0 0.0
    %1159 = vmatpush.msra.mxu0 0.0
    %1160 = vmatpush.msra.mxu0 0.0
    %1161 = vmatpush.msra.mxu0 0.0
    %1162 = vmatpush.msra.mxu0 0.0
    %1163 = vmatpush.msra.mxu0 0.0
    %1164 = vmatpush.msra.mxu0 0.0
    %1165 = vmatpush.msra.mxu0 0.0
    %1166 = vmatpush.msra.mxu0 0.0
    %1167 = vmatpush.msra.mxu0 0.0
    %1168 = vmatpush.msra.mxu0 0.0
    %1169 = vmatpush.msra.mxu0 0.0
    %1170 = vmatpush.msra.mxu0 0.0
    %1171 = vmatpush.msra.mxu0 0.0
    %1172 = vmatpush.msra.mxu0 %v1130
    %1173 = vmatpush.msra.mxu0 %v1129
    %1174 = vmatmul.f32.gmra.mxu0 %v1132
    %v1175 = vpop.f32.mrf.mxu0
    %v1176 = vadd.f32 0.0, %v1175
    %1177 = vmatmul.f32.gmra.mxu0 %v1135
    %v1178 = vpop.f32.mrf.mxu0
    %v1179 = vadd.f32 0.0, %v1178
    %1180 = vmatmul.f32.gmra.mxu0 %v1138
    %v1181 = vpop.f32.mrf.mxu0
    %v1182 = vadd.f32 0.0, %v1181
    %1183 = vmatmul.f32.gmra.mxu0 %v1141
    %v1184 = vpop.f32.mrf.mxu0
    %v1185 = vadd.f32 0.0, %v1184
    %1186 = vmatmul.f32.gmra.mxu0 %v1144
    %v1187 = vpop.f32.mrf.mxu0
    %v1188 = vadd.f32 0.0, %v1187
    %1189 = vmatmul.f32.gmra.mxu0 %v1147
    %v1190 = vpop.f32.mrf.mxu0
    %v1191 = vadd.f32 0.0, %v1190
    %1192 = vmatmul.f32.gmra.mxu0 %v1150
    %v1193 = vpop.f32.mrf.mxu0
    %v1194 = vadd.f32 0.0, %v1193
    %1195 = vmatmul.f32.gmra.mxu0 %v1153
    %v1196 = vpop.f32.mrf.mxu0
    %v1197 = vadd.f32 0.0, %v1196
    %1198 = vmatmul.f32.gmra.mxu0 %v1156
    %v1199 = vpop.f32.mrf.mxu0
    %v1200 = vadd.f32 0.0, %v1199
    %1201 = vdwg.mxu0
    %v1203 = vsel %vm692, %v661, 0
    %v1206 = vsel %vm692, %v662, 0
    %v1209 = vsel %vm692, %v663, 0
    %v1212 = vsel %vm692, %v664, 0
    %v1215 = vsel %vm692, %v665, 0
    %v1218 = vsel %vm692, %v666, 0
    %v1221 = vsel %vm692, %v667, 0
    %v1224 = vsel %vm692, %v668, 0
    %v1227 = vsel %vm692, %v669, 0
    %1229 = vmatpush.msra.mxu0 0.0
    %1230 = vmatpush.msra.mxu0 0.0
    %1231 = vmatpush.msra.mxu0 0.0
    %1232 = vmatpush.msra.mxu0 0.0
    %1233 = vmatpush.msra.mxu0 0.0
    %1234 = vmatpush.msra.mxu0 0.0
    %1235 = vmatpush.msra.mxu0 0.0
    %1236 = vmatpush.msra.mxu0 0.0
    %1237 = vmatpush.msra.mxu0 0.0
    %1238 = vmatpush.msra.mxu0 0.0
    %1239 = vmatpush.msra.mxu0 0.0
    %1240 = vmatpush.msra.mxu0 0.0
    %1241 = vmatpush.msra.mxu0 0.0
    %1242 = vmatpush.msra.mxu0 0.0
    %1243 = vmatpush.msra.mxu0 %v1128
    %1244 = vmatpush.msra.mxu0 %v1127
    %1245 = vmatmul.f32.gmra.mxu0 %v1203
    %v1246 = vpop.f32.mrf.mxu0
    %v1247 = vadd.f32 %v1176, %v1246
    %1248 = vmatmul.f32.gmra.mxu0 %v1206
    %v1249 = vpop.f32.mrf.mxu0
    %v1250 = vadd.f32 %v1179, %v1249
    %1251 = vmatmul.f32.gmra.mxu0 %v1209
    %v1252 = vpop.f32.mrf.mxu0
    %v1253 = vadd.f32 %v1182, %v1252
    %1254 = vmatmul.f32.gmra.mxu0 %v1212
    %v1255 = vpop.f32.mrf.mxu0
    %v1256 = vadd.f32 %v1185, %v1255
    %1257 = vmatmul.f32.gmra.mxu0 %v1215
    %v1258 = vpop.f32.mrf.mxu0
    %v1259 = vadd.f32 %v1188, %v1258
    %1260 = vmatmul.f32.gmra.mxu0 %v1218
    %v1261 = vpop.f32.mrf.mxu0
    %v1262 = vadd.f32 %v1191, %v1261
    %1263 = vmatmul.f32.gmra.mxu0 %v1221
    %v1264 = vpop.f32.mrf.mxu0
    %v1265 = vadd.f32 %v1194, %v1264
    %1266 = vmatmul.f32.gmra.mxu0 %v1224
    %v1267 = vpop.f32.mrf.mxu0
    %v1268 = vadd.f32 %v1197, %v1267
    %1269 = vmatmul.f32.gmra.mxu0 %v1227
    %v1270 = vpop.f32.mrf.mxu0
    %v1271 = vadd.f32 %v1200, %v1270
    %1272 = vdwg.mxu0
    %v1273 = vld [vmem:[%s1 + $0xa0] sm:$0xff]
    %v1274 = vld [vmem:[%s1 + $0xa8] sm:$0xff]
    %v1276 = vsel %vm692, %v679, 0
    %v1279 = vsel %vm692, %v680, 0
    %v1282 = vsel %vm692, %v681, 0
    %v1285 = vsel %vm692, %v682, 0
    %v1288 = vsel %vm692, %v683, 0
    %v1291 = vsel %vm692, %v684, 0
    %v1294 = vsel %vm692, %v685, 0
    %v1297 = vsel %vm692, %v686, 0
    %v1300 = vsel %vm692, %v687, 0
    %1302 = vmatpush.msra.mxu0 0.0
    %1303 = vmatpush.msra.mxu0 0.0
    %1304 = vmatpush.msra.mxu0 0.0
    %1305 = vmatpush.msra.mxu0 0.0
    %1306 = vmatpush.msra.mxu0 0.0
    %1307 = vmatpush.msra.mxu0 0.0
    %1308 = vmatpush.msra.mxu0 0.0
    %1309 = vmatpush.msra.mxu0 0.0
    %1310 = vmatpush.msra.mxu0 0.0
    %1311 = vmatpush.msra.mxu0 0.0
    %1312 = vmatpush.msra.mxu0 0.0
    %1313 = vmatpush.msra.mxu0 0.0
    %1314 = vmatpush.msra.mxu0 0.0
    %1315 = vmatpush.msra.mxu0 0.0
    %1316 = vmatpush.msra.mxu0 %v1274
    %1317 = vmatpush.msra.mxu0 %v1273
    %1318 = vmatmul.f32.gmra.mxu0 %v1276
    %v1319 = vpop.f32.mrf.mxu0
    %v1320 = vadd.f32 0.0, %v1319
    %1321 = vmatmul.f32.gmra.mxu0 %v1279
    %v1322 = vpop.f32.mrf.mxu0
    %v1323 = vadd.f32 0.0, %v1322
    %1324 = vmatmul.f32.gmra.mxu0 %v1282
    %v1325 = vpop.f32.mrf.mxu0
    %v1326 = vadd.f32 0.0, %v1325
    %1327 = vmatmul.f32.gmra.mxu0 %v1285
    %v1328 = vpop.f32.mrf.mxu0
    %v1329 = vadd.f32 0.0, %v1328
    %1330 = vmatmul.f32.gmra.mxu0 %v1288
    %v1331 = vpop.f32.mrf.mxu0
    %v1332 = vadd.f32 0.0, %v1331
    %1333 = vmatmul.f32.gmra.mxu0 %v1291
    %v1334 = vpop.f32.mrf.mxu0
    %v1335 = vadd.f32 0.0, %v1334
    %1336 = vmatmul.f32.gmra.mxu0 %v1294
    %v1337 = vpop.f32.mrf.mxu0
    %v1338 = vadd.f32 0.0, %v1337
    %1339 = vmatmul.f32.gmra.mxu0 %v1297
    %v1340 = vpop.f32.mrf.mxu0
    %v1341 = vadd.f32 0.0, %v1340
    %1342 = vmatmul.f32.gmra.mxu0 %v1300
    %v1343 = vpop.f32.mrf.mxu0
    %v1344 = vadd.f32 0.0, %v1343
    %1345 = vdwg.mxu0
    %v1346 = vadd.f32 %v809, %v955
    %v1347 = vadd.f32 %v812, %v958
    %v1348 = vadd.f32 %v815, %v961
    %v1349 = vadd.f32 %v818, %v964
    %v1350 = vadd.f32 %v821, %v967
    %v1351 = vadd.f32 %v824, %v970
    %v1352 = vadd.f32 %v827, %v973
    %v1353 = vadd.f32 %v830, %v976
    %v1354 = vadd.f32 %v833, %v979
    %v1355 = vadd.f32 %v1101, %v1247
    %v1356 = vadd.f32 %v1104, %v1250
    %v1357 = vadd.f32 %v1107, %v1253
    %v1358 = vadd.f32 %v1110, %v1256
    %v1359 = vadd.f32 %v1113, %v1259
    %v1360 = vadd.f32 %v1116, %v1262
    %v1361 = vadd.f32 %v1119, %v1265
    %v1362 = vadd.f32 %v1122, %v1268
    %v1363 = vadd.f32 %v1125, %v1271
    %v1364 = vadd.f32 %v1346, %v1355
    %v1365 = vadd.f32 %v1347, %v1356
    %v1366 = vadd.f32 %v1348, %v1357
    %v1367 = vadd.f32 %v1349, %v1358
    %v1368 = vadd.f32 %v1350, %v1359
    %v1369 = vadd.f32 %v1351, %v1360
    %v1370 = vadd.f32 %v1352, %v1361
    %v1371 = vadd.f32 %v1353, %v1362
    %v1372 = vadd.f32 %v1354, %v1363
    %v1373 = vadd.f32 %v1364, %v1320
    %v1374 = vadd.f32 %v1365, %v1323
    %v1375 = vadd.f32 %v1366, %v1326
    %v1376 = vadd.f32 %v1367, %v1329
    %v1377 = vadd.f32 %v1368, %v1332
    %v1378 = vadd.f32 %v1369, %v1335
    %v1379 = vadd.f32 %v1370, %v1338
    %v1380 = vadd.f32 %v1371, %v1341
    %v1381 = vadd.f32 %v1372, %v1344
    %v1382 = vperm.slane %v12, 1
    %v1383 = vadd.f32 %v1373, %v1382
    %v1384 = vadd.f32 %v1374, %v1382
    %v1385 = vadd.f32 %v1375, %v1382
    %v1386 = vadd.f32 %v1376, %v1382
    %v1387 = vadd.f32 %v1377, %v1382
    %v1388 = vadd.f32 %v1378, %v1382
    %v1389 = vadd.f32 %v1379, %v1382
    %v1390 = vadd.f32 %v1380, %v1382
    %v1391 = vadd.f32 %v1381, %v1382
    %v1392 = vmax.f32 %v1383, 0.0
    %v1393 = vmax.f32 %v1384, 0.0
    %v1394 = vmax.f32 %v1385, 0.0
    %v1395 = vmax.f32 %v1386, 0.0
    %v1396 = vmax.f32 %v1387, 0.0
    %v1397 = vmax.f32 %v1388, 0.0
    %v1398 = vmax.f32 %v1389, 0.0
    %v1399 = vmax.f32 %v1390, 0.0
    %v1400 = vmax.f32 %v1391, 0.0
    %v1401 = vld [vmem:[%s1 + $0xb0] sm:$0xff]
    %v1402 = vld [vmem:[%s1 + $0xb8] sm:$0xff]
    %v1403 = vld [vmem:[%s1 + $0xc0] sm:$0xff]
    %v1404 = vld [vmem:[%s1 + $0xc8] sm:$0xff]
    %v1405 = vld [vmem:[%s1 + $0xd0] sm:$0xff]
    %v1406 = vld [vmem:[%s1 + $0xd8] sm:$0xff]
    %v1407 = vld [vmem:[%s1 + $0xe0] sm:$0xff]
    %v1408 = vld [vmem:[%s1 + $0xe8] sm:$0xff]
    %vm1409 = vcmask 261120
    %v1411 = vsel %vm1409, %v1393, 0
    %1413 = vmatpush.msra.mxu0 0.0
    %1414 = vmatpush.msra.mxu0 0.0
    %1415 = vmatpush.msra.mxu0 0.0
    %1416 = vmatpush.msra.mxu0 0.0
    %1417 = vmatpush.msra.mxu0 0.0
    %1418 = vmatpush.msra.mxu0 0.0
    %1419 = vmatpush.msra.mxu0 0.0
    %1420 = vmatpush.msra.mxu0 0.0
    %1421 = vmatpush.msra.mxu0 0.0
    %1422 = vmatpush.msra.mxu0 0.0
    %1423 = vmatpush.msra.mxu0 0.0
    %1424 = vmatpush.msra.mxu0 0.0
    %1425 = vmatpush.msra.mxu0 %v1408
    %1426 = vmatpush.msra.mxu0 %v1407
    %1427 = vmatpush.msra.mxu0 %v1406
    %1428 = vmatpush.msra.mxu0 %v1405
    %1429 = vmatmul.f32.gmra.mxu0 %v1411
    %v1430 = vpop.f32.mrf.mxu0
    %v1431 = vadd.f32 0.0, %v1430
    %1432 = vdwg.mxu0
    %v1434 = vsel %vm1409, %v1392, 0
    %1436 = vmatpush.msra.mxu0 0.0
    %1437 = vmatpush.msra.mxu0 0.0
    %1438 = vmatpush.msra.mxu0 0.0
    %1439 = vmatpush.msra.mxu0 0.0
    %1440 = vmatpush.msra.mxu0 0.0
    %1441 = vmatpush.msra.mxu0 0.0
    %1442 = vmatpush.msra.mxu0 0.0
    %1443 = vmatpush.msra.mxu0 0.0
    %1444 = vmatpush.msra.mxu0 0.0
    %1445 = vmatpush.msra.mxu0 0.0
    %1446 = vmatpush.msra.mxu0 0.0
    %1447 = vmatpush.msra.mxu0 0.0
    %1448 = vmatpush.msra.mxu0 %v1404
    %1449 = vmatpush.msra.mxu0 %v1403
    %1450 = vmatpush.msra.mxu0 %v1402
    %1451 = vmatpush.msra.mxu0 %v1401
    %1452 = vmatmul.f32.gmra.mxu0 %v1434
    %v1453 = vpop.f32.mrf.mxu0
    %v1454 = vadd.f32 %v1431, %v1453
    %1455 = vdwg.mxu0
    %v1456 = vld [vmem:[%s1 + $0xf0] sm:$0xff]
    %v1457 = vld [vmem:[%s1 + $0xf8] sm:$0xff]
    %v1458 = vld [vmem:[%s1 + $0x100] sm:$0xff]
    %v1459 = vld [vmem:[%s1 + $0x108] sm:$0xff]
    %v1460 = vld [vmem:[%s1 + $0x110] sm:$0xff]
    %v1461 = vld [vmem:[%s1 + $0x118] sm:$0xff]
    %v1462 = vld [vmem:[%s1 + $0x120] sm:$0xff]
    %v1463 = vld [vmem:[%s1 + $0x128] sm:$0xff]
    %v1465 = vsel %vm1409, %v1395, 0
    %1467 = vmatpush.msra.mxu0 0.0
    %1468 = vmatpush.msra.mxu0 0.0
    %1469 = vmatpush.msra.mxu0 0.0
    %1470 = vmatpush.msra.mxu0 0.0
    %1471 = vmatpush.msra.mxu0 0.0
    %1472 = vmatpush.msra.mxu0 0.0
    %1473 = vmatpush.msra.mxu0 0.0
    %1474 = vmatpush.msra.mxu0 0.0
    %1475 = vmatpush.msra.mxu0 0.0
    %1476 = vmatpush.msra.mxu0 0.0
    %1477 = vmatpush.msra.mxu0 0.0
    %1478 = vmatpush.msra.mxu0 0.0
    %1479 = vmatpush.msra.mxu0 %v1463
    %1480 = vmatpush.msra.mxu0 %v1462
    %1481 = vmatpush.msra.mxu0 %v1461
    %1482 = vmatpush.msra.mxu0 %v1460
    %1483 = vmatmul.f32.gmra.mxu0 %v1465
    %v1484 = vpop.f32.mrf.mxu0
    %v1485 = vadd.f32 0.0, %v1484
    %1486 = vdwg.mxu0
    %v1488 = vsel %vm1409, %v1394, 0
    %1490 = vmatpush.msra.mxu0 0.0
    %1491 = vmatpush.msra.mxu0 0.0
    %1492 = vmatpush.msra.mxu0 0.0
    %1493 = vmatpush.msra.mxu0 0.0
    %1494 = vmatpush.msra.mxu0 0.0
    %1495 = vmatpush.msra.mxu0 0.0
    %1496 = vmatpush.msra.mxu0 0.0
    %1497 = vmatpush.msra.mxu0 0.0
    %1498 = vmatpush.msra.mxu0 0.0
    %1499 = vmatpush.msra.mxu0 0.0
    %1500 = vmatpush.msra.mxu0 0.0
    %1501 = vmatpush.msra.mxu0 0.0
    %1502 = vmatpush.msra.mxu0 %v1459
    %1503 = vmatpush.msra.mxu0 %v1458
    %1504 = vmatpush.msra.mxu0 %v1457
    %1505 = vmatpush.msra.mxu0 %v1456
    %1506 = vmatmul.f32.gmra.mxu0 %v1488
    %v1507 = vpop.f32.mrf.mxu0
    %v1508 = vadd.f32 %v1485, %v1507
    %1509 = vdwg.mxu0
    %v1510 = vld [vmem:[%s1 + $0x130] sm:$0xff]
    %v1511 = vld [vmem:[%s1 + $0x138] sm:$0xff]
    %v1512 = vld [vmem:[%s1 + $0x140] sm:$0xff]
    %v1513 = vld [vmem:[%s1 + $0x148] sm:$0xff]
    %v1514 = vld [vmem:[%s1 + $0x150] sm:$0xff]
    %v1515 = vld [vmem:[%s1 + $0x158] sm:$0xff]
    %v1516 = vld [vmem:[%s1 + $0x160] sm:$0xff]
    %v1517 = vld [vmem:[%s1 + $0x168] sm:$0xff]
    %v1519 = vsel %vm1409, %v1397, 0
    %1521 = vmatpush.msra.mxu0 0.0
    %1522 = vmatpush.msra.mxu0 0.0
    %1523 = vmatpush.msra.mxu0 0.0
    %1524 = vmatpush.msra.mxu0 0.0
    %1525 = vmatpush.msra.mxu0 0.0
    %1526 = vmatpush.msra.mxu0 0.0
    %1527 = vmatpush.msra.mxu0 0.0
    %1528 = vmatpush.msra.mxu0 0.0
    %1529 = vmatpush.msra.mxu0 0.0
    %1530 = vmatpush.msra.mxu0 0.0
    %1531 = vmatpush.msra.mxu0 0.0
    %1532 = vmatpush.msra.mxu0 0.0
    %1533 = vmatpush.msra.mxu0 %v1517
    %1534 = vmatpush.msra.mxu0 %v1516
    %1535 = vmatpush.msra.mxu0 %v1515
    %1536 = vmatpush.msra.mxu0 %v1514
    %1537 = vmatmul.f32.gmra.mxu0 %v1519
    %v1538 = vpop.f32.mrf.mxu0
    %v1539 = vadd.f32 0.0, %v1538
    %1540 = vdwg.mxu0
    %v1542 = vsel %vm1409, %v1396, 0
    %1544 = vmatpush.msra.mxu0 0.0
    %1545 = vmatpush.msra.mxu0 0.0
    %1546 = vmatpush.msra.mxu0 0.0
    %1547 = vmatpush.msra.mxu0 0.0
    %1548 = vmatpush.msra.mxu0 0.0
    %1549 = vmatpush.msra.mxu0 0.0
    %1550 = vmatpush.msra.mxu0 0.0
    %1551 = vmatpush.msra.mxu0 0.0
    %1552 = vmatpush.msra.mxu0 0.0
    %1553 = vmatpush.msra.mxu0 0.0
    %1554 = vmatpush.msra.mxu0 0.0
    %1555 = vmatpush.msra.mxu0 0.0
    %1556 = vmatpush.msra.mxu0 %v1513
    %1557 = vmatpush.msra.mxu0 %v1512
    %1558 = vmatpush.msra.mxu0 %v1511
    %1559 = vmatpush.msra.mxu0 %v1510
    %1560 = vmatmul.f32.gmra.mxu0 %v1542
    %v1561 = vpop.f32.mrf.mxu0
    %v1562 = vadd.f32 %v1539, %v1561
    %1563 = vdwg.mxu0
    %v1564 = vld [vmem:[%s1 + $0x170] sm:$0xff]
    %v1565 = vld [vmem:[%s1 + $0x178] sm:$0xff]
    %v1566 = vld [vmem:[%s1 + $0x180] sm:$0xff]
    %v1567 = vld [vmem:[%s1 + $0x188] sm:$0xff]
    %v1568 = vld [vmem:[%s1 + $0x190] sm:$0xff]
    %v1569 = vld [vmem:[%s1 + $0x198] sm:$0xff]
    %v1570 = vld [vmem:[%s1 + $0x1a0] sm:$0xff]
    %v1571 = vld [vmem:[%s1 + $0x1a8] sm:$0xff]
    %v1573 = vsel %vm1409, %v1399, 0
    %1575 = vmatpush.msra.mxu0 0.0
    %1576 = vmatpush.msra.mxu0 0.0
    %1577 = vmatpush.msra.mxu0 0.0
    %1578 = vmatpush.msra.mxu0 0.0
    %1579 = vmatpush.msra.mxu0 0.0
    %1580 = vmatpush.msra.mxu0 0.0
    %1581 = vmatpush.msra.mxu0 0.0
    %1582 = vmatpush.msra.mxu0 0.0
    %1583 = vmatpush.msra.mxu0 0.0
    %1584 = vmatpush.msra.mxu0 0.0
    %1585 = vmatpush.msra.mxu0 0.0
    %1586 = vmatpush.msra.mxu0 0.0
    %1587 = vmatpush.msra.mxu0 %v1571
    %1588 = vmatpush.msra.mxu0 %v1570
    %1589 = vmatpush.msra.mxu0 %v1569
    %1590 = vmatpush.msra.mxu0 %v1568
    %1591 = vmatmul.f32.gmra.mxu0 %v1573
    %v1592 = vpop.f32.mrf.mxu0
    %v1593 = vadd.f32 0.0, %v1592
    %1594 = vdwg.mxu0
    %v1596 = vsel %vm1409, %v1398, 0
    %1598 = vmatpush.msra.mxu0 0.0
    %1599 = vmatpush.msra.mxu0 0.0
    %1600 = vmatpush.msra.mxu0 0.0
    %1601 = vmatpush.msra.mxu0 0.0
    %1602 = vmatpush.msra.mxu0 0.0
    %1603 = vmatpush.msra.mxu0 0.0
    %1604 = vmatpush.msra.mxu0 0.0
    %1605 = vmatpush.msra.mxu0 0.0
    %1606 = vmatpush.msra.mxu0 0.0
    %1607 = vmatpush.msra.mxu0 0.0
    %1608 = vmatpush.msra.mxu0 0.0
    %1609 = vmatpush.msra.mxu0 0.0
    %1610 = vmatpush.msra.mxu0 %v1567
    %1611 = vmatpush.msra.mxu0 %v1566
    %1612 = vmatpush.msra.mxu0 %v1565
    %1613 = vmatpush.msra.mxu0 %v1564
    %1614 = vmatmul.f32.gmra.mxu0 %v1596
    %v1615 = vpop.f32.mrf.mxu0
    %v1616 = vadd.f32 %v1593, %v1615
    %1617 = vdwg.mxu0
    %v1618 = vld [vmem:[%s1 + $0x1b0] sm:$0xff]
    %v1619 = vld [vmem:[%s1 + $0x1b8] sm:$0xff]
    %v1620 = vld [vmem:[%s1 + $0x1c0] sm:$0xff]
    %v1621 = vld [vmem:[%s1 + $0x1c8] sm:$0xff]
    %v1623 = vsel %vm1409, %v1400, 0
    %1625 = vmatpush.msra.mxu0 0.0
    %1626 = vmatpush.msra.mxu0 0.0
    %1627 = vmatpush.msra.mxu0 0.0
    %1628 = vmatpush.msra.mxu0 0.0
    %1629 = vmatpush.msra.mxu0 0.0
    %1630 = vmatpush.msra.mxu0 0.0
    %1631 = vmatpush.msra.mxu0 0.0
    %1632 = vmatpush.msra.mxu0 0.0
    %1633 = vmatpush.msra.mxu0 0.0
    %1634 = vmatpush.msra.mxu0 0.0
    %1635 = vmatpush.msra.mxu0 0.0
    %1636 = vmatpush.msra.mxu0 0.0
    %1637 = vmatpush.msra.mxu0 %v1621
    %1638 = vmatpush.msra.mxu0 %v1620
    %1639 = vmatpush.msra.mxu0 %v1619
    %1640 = vmatpush.msra.mxu0 %v1618
    %1641 = vmatmul.f32.gmra.mxu0 %v1623
    %v1642 = vpop.f32.mrf.mxu0
    %v1643 = vadd.f32 0.0, %v1642
    %1644 = vdwg.mxu0
    %v1645 = vadd.f32 %v1454, %v1508
    %v1646 = vadd.f32 %v1562, %v1616
    %v1647 = vadd.f32 %v1645, %v1646
    %v1648 = vadd.f32 %v1647, %v1643
    %v1649 = vperm.slane %v12, 2
    %v1650 = vadd.f32 %v1648, %v1649
    %v1651 = vmax.f32 %v1650, 0.0
    %v1652 = vld [vmem:[%s1 + $0x1d0] sm:$0xff]
    %v1653 = vld [vmem:[%s1 + $0x1d8] sm:$0xff]
    %v1654 = vld [vmem:[%s1 + $0x1e0] sm:$0xff]
    %v1655 = vld [vmem:[%s1 + $0x1e8] sm:$0xff]
    %v1656 = vld [vmem:[%s1 + $0x1f0] sm:$0xff]
    %v1657 = vld [vmem:[%s1 + $0x1f8] sm:$0xff]
    %v1658 = vld [vmem:[%s1 + $0x200] sm:$0xff]
    %v1659 = vld [vmem:[%s1 + $0x208] sm:$0xff]
    %v1661 = vrot.slane %v1651, 2
    %v1662 = vsel %vm1409, %v1661, 0
    %1664 = vmatpush.msra.mxu0 0.0
    %1665 = vmatpush.msra.mxu0 0.0
    %1666 = vmatpush.msra.mxu0 0.0
    %1667 = vmatpush.msra.mxu0 0.0
    %1668 = vmatpush.msra.mxu0 0.0
    %1669 = vmatpush.msra.mxu0 0.0
    %1670 = vmatpush.msra.mxu0 0.0
    %1671 = vmatpush.msra.mxu0 0.0
    %1672 = vmatpush.msra.mxu0 0.0
    %1673 = vmatpush.msra.mxu0 0.0
    %1674 = vmatpush.msra.mxu0 0.0
    %1675 = vmatpush.msra.mxu0 0.0
    %1676 = vmatpush.msra.mxu0 %v1659
    %1677 = vmatpush.msra.mxu0 %v1658
    %1678 = vmatpush.msra.mxu0 %v1657
    %1679 = vmatpush.msra.mxu0 %v1656
    %1680 = vmatmul.f32.gmra.mxu0 %v1662
    %v1681 = vpop.f32.mrf.mxu0
    %v1682 = vadd.f32 0.0, %v1681
    %1683 = vdwg.mxu0
    %v1684 = vsel %vm1409, %v1651, 0
    %1686 = vmatpush.msra.mxu0 0.0
    %1687 = vmatpush.msra.mxu0 0.0
    %1688 = vmatpush.msra.mxu0 0.0
    %1689 = vmatpush.msra.mxu0 0.0
    %1690 = vmatpush.msra.mxu0 0.0
    %1691 = vmatpush.msra.mxu0 0.0
    %1692 = vmatpush.msra.mxu0 0.0
    %1693 = vmatpush.msra.mxu0 0.0
    %1694 = vmatpush.msra.mxu0 0.0
    %1695 = vmatpush.msra.mxu0 0.0
    %1696 = vmatpush.msra.mxu0 0.0
    %1697 = vmatpush.msra.mxu0 0.0
    %1698 = vmatpush.msra.mxu0 %v1655
    %1699 = vmatpush.msra.mxu0 %v1654
    %1700 = vmatpush.msra.mxu0 %v1653
    %1701 = vmatpush.msra.mxu0 %v1652
    %1702 = vmatmul.f32.gmra.mxu0 %v1684
    %v1703 = vpop.f32.mrf.mxu0
    %v1704 = vadd.f32 %v1682, %v1703
    %1705 = vdwg.mxu0
    %v1706 = vperm.slane %v12, 3
    %v1707 = vadd.f32 %v1704, %v1706
    %v1708 = vmax.f32 %v1707, 0.0
    %v1709 = vld [vmem:[%s1 + $0x210] sm:$0xff]
    %v1710 = vld [vmem:[%s1 + $0x218] sm:$0xff]
    %v1711 = vld [vmem:[%s1 + $0x220] sm:$0xff]
    %v1712 = vld [vmem:[%s1 + $0x228] sm:$0xff]
    %v1713 = vld [vmem:[%s1 + $0x230] sm:$0xff]
    %v1714 = vld [vmem:[%s1 + $0x238] sm:$0xff]
    %v1715 = vld [vmem:[%s1 + $0x240] sm:$0xff]
    %v1716 = vld [vmem:[%s1 + $0x248] sm:$0xff]
    %v1717 = vperm.slane %v12, 4
    %vm1718 = vcmask 523264
    %v1720 = vsel %vm1718, %v1708, 0
    %1722 = vmatpush.msra.mxu0 0.0
    %1723 = vmatpush.msra.mxu0 0.0
    %1724 = vmatpush.msra.mxu0 0.0
    %1725 = vmatpush.msra.mxu0 0.0
    %1726 = vmatpush.msra.mxu0 0.0
    %1727 = vmatpush.msra.mxu0 0.0
    %1728 = vmatpush.msra.mxu0 0.0
    %1729 = vmatpush.msra.mxu0 0.0
    %1730 = vmatpush.msra.mxu0 %v1716
    %1731 = vmatpush.msra.mxu0 %v1715
    %1732 = vmatpush.msra.mxu0 %v1714
    %1733 = vmatpush.msra.mxu0 %v1713
    %1734 = vmatpush.msra.mxu0 %v1712
    %1735 = vmatpush.msra.mxu0 %v1711
    %1736 = vmatpush.msra.mxu0 %v1710
    %1737 = vmatpush.msra.mxu0 %v1709
    %1738 = vmatmul.f32.gmra.mxu0 %v1720
    %v1739 = vpop.f32.mrf.mxu0
    %v1740 = vadd.f32 %v1717, %v1739
    %1741 = vdwg.mxu0
    %v1742 = vmax.f32 %v1740, 0.0
    %v1743 = vld [vmem:[%s1 + $0x250] sm:$0xff]
    %v1744 = vld [vmem:[%s1 + $0x258] sm:$0xff]
    %v1745 = vld [vmem:[%s1 + $0x260] sm:$0xff]
    %v1746 = vld [vmem:[%s1 + $0x268] sm:$0xff]
    %v1747 = vperm.slane %v12, 5
    %v1749 = vsel %vm1409, %v1742, 0
    %1751 = vmatpush.msra.mxu0 0.0
    %1752 = vmatpush.msra.mxu0 0.0
    %1753 = vmatpush.msra.mxu0 0.0
    %1754 = vmatpush.msra.mxu0 0.0
    %1755 = vmatpush.msra.mxu0 0.0
    %1756 = vmatpush.msra.mxu0 0.0
    %1757 = vmatpush.msra.mxu0 0.0
    %1758 = vmatpush.msra.mxu0 0.0
    %1759 = vmatpush.msra.mxu0 0.0
    %1760 = vmatpush.msra.mxu0 0.0
    %1761 = vmatpush.msra.mxu0 0.0
    %1762 = vmatpush.msra.mxu0 0.0
    %1763 = vmatpush.msra.mxu0 %v1746
    %1764 = vmatpush.msra.mxu0 %v1745
    %1765 = vmatpush.msra.mxu0 %v1744
    %1766 = vmatpush.msra.mxu0 %v1743
    %1767 = vmatmul.f32.gmra.mxu0 %v1749
    %v1768 = vpop.f32.mrf.mxu0
    %v1769 = vadd.f32 %v1747, %v1768
    %1770 = vdwg.mxu0
    %vm1771 = vcmask 25600
    %v1772 = vsel %vm1771, %v1769, 0.0
    %1773 = vadd.xlane.f32.xlu0 %v1772
    %v1774 = vpop.xlane.xlu0 %1773
    %v1775 = vrot.slane %v1774, 4
    %v1776 = vadd.f32 %v1774, %v1775
    %v1777 = vrot.slane %v1776, 2
    %v1778 = vadd.f32 %v1776, %v1777
    %v1779 = vrot.slane %v1778, 1
    %v1780 = vadd.f32 %v1778, %v1779
    %s1781 = vtos %v1780
    %s1782 = smul.f32 %s1781, 0.125
    %v1783 = vstv %s1782
    %v1784 = vsub.f32 %v1769, %v1783
    %1786 = vset.pattern.permute.xlu0 4
    %1787 = vperm.xlu0 %1786, %v1769
    %v1788 = vpop.permute.xlu0 %1787
    %v1790 = vadd.f32 %v1788, %v1784
    %1791 = vst.msk [vmem:[#allocation2] sm:$0x3] %vm1771, %v1790
    // Predicated region
    $region10: #{forward.1} parent=1 // pred_check
      _
    $region11: #{forward.1} parent=1 // pred_check_branch
      %1793 = sbr.rel (0) target = $region13
    $region12: #{forward.1} parent=1 // pred_region
      %1795 = vsyncadd [#allocation3], 0
      %s1797 = sshll.u32 [#allocation2], 4
      %s1798 = int_to_ptr.vmem [resolvable:$true] %s1797
      %s1799 = sshll.u32 %s2, 4
      %s1800 = int_to_ptr.hbm [resolvable:$true] %s1799
      %1802 = dma.vmem_to_hbm [thread:$0]  %s1798, 32, %s1800, [#allocation3]
    $region13: #{forward.1} parent=1 // pred_fallthru
      _
    // Predicated region
    $region14: #{forward.1} parent=1 // pred_check
      _
    $region15: #{forward.1} parent=1 // pred_check_branch
      %1804 = sbr.rel (0) target = $region17
    $region16: #{forward.1} parent=1 // pred_region
      %1806 = dma.done [#allocation3], 32
    $region17: #{forward.1} parent=1 // pred_fallthru
      _
    %1807 = vsyncpa [#allocation3], 1

</llo_original>
